<compile_context>
chip_gen: v5e
topology: v5e:2x2
jax: 0.10.0
libtpu: 0.0.40
codegen_flags: <defaults>
</compile_context>

<pallas_src>
import numpy as np

import jax
import jax.numpy as jnp
from jax.experimental import pallas as pl
from jax.experimental.pallas import tpu as pltpu


# ----------------------------------------------------------------------------
# Single fused Pallas kernel: the whole VAE forward as a VMEM-resident GEMM
# chain. bf16 MXU operands, f32 accumulation, activations fused on VPU/EUP.
# ----------------------------------------------------------------------------
def _vae_fused_kernel(x_ref,
                      we1_ref, be1_ref,        # encoder conv1   (dense fold)
                      we2_ref, be2_ref,        # encoder conv2   (dense fold)
                      wmu_ref, bmu_ref,        # latent linear, mu columns
                      wlv_ref, blv_ref,        # latent linear, logvar columns
                      wpd1_ref, bpd1_ref,      # post_latent ∘ deconv1 (folded)
                      wd2_ref,                 # decoder deconv2 (dense, no bias)
                      xrec_ref, mu_ref, logvar_ref):
    bf16 = jnp.bfloat16
    f32 = jnp.float32

    def gemm(a, w_ref, b_ref=None):
        acc = jnp.dot(a.astype(bf16), w_ref[...], preferred_element_type=f32)
        if b_ref is not None:
            acc = acc + b_ref[...]               # (1, N) broadcasts over rows
        return acc

    def leaky_relu(v):                           # LeakyReLU(0.2)
        return jnp.where(v >= 0, v, 0.2 * v)

    x = x_ref[...]                               # (B, nc*w*w), bf16

    # ---- encoder ----
    h = leaky_relu(gemm(x, we1_ref, be1_ref))    # Conv2d(nc, ndf, 4, 2, 1)
    h = leaky_relu(gemm(h, we2_ref, be2_ref))    # Conv2d(ndf, 2ndf, 4, 2, 1)

    # ---- latent: Linear(nf*wl*wl, 2L), split column-wise into mu / logvar ----
    mu = gemm(h, wmu_ref, bmu_ref)
    logvar = gemm(h, wlv_ref, blv_ref)
    mu_ref[...] = mu.astype(mu_ref.dtype)
    logvar_ref[...] = logvar.astype(logvar_ref.dtype)

    # objective == 'ae'  =>  h = mu (no reparameterization / no randomness)
    z = mu

    # ---- decoder ----
    # post_latent Linear and ConvT(2ndf, ndf, 4, 2, 1) are linear with no
    # activation between them -> folded host-side into one (L, ndf*8*8) GEMM.
    d = jnp.maximum(gemm(z, wpd1_ref, bpd1_ref), 0.0)   # + ReLU
    d = gemm(d, wd2_ref)                                # ConvT(ndf,nc,4,2,1), no bias
    # sigmoid: exp and approx reciprocal both land on the EUP (frees VPU slots)
    xrec = pl.reciprocal(1.0 + jnp.exp(-d), approx=True)
    xrec_ref[...] = jnp.clip(xrec, 0.0, 1.0).astype(xrec_ref.dtype)


def _full_spec(shape):
    # whole-array block resident in VMEM for the single grid step
    return pl.BlockSpec(shape, lambda *_: (0,) * len(shape))


def vae_forward(x, dp, cfg):
    """x: (B, nc, w, w) NCHW -> (xrec NCHW, mu, logvar). One pallas_call."""
    B = x.shape[0]
    nc, w, L = cfg["nc"], cfg["w"], cfg["latent_size"]

    # same flattening order as torch .view(B, -1) on NCHW
    x_flat = x.reshape(B, -1).astype(jnp.bfloat16)

    args = (x_flat,
            dp["we1"], dp["be1"], dp["we2"], dp["be2"],
            dp["wmu"], dp["bmu"], dp["wlv"], dp["blv"],
            dp["wpd1"], dp["bpd1"], dp["wd2"])

    out_shape = (jax.ShapeDtypeStruct((B, nc * w * w), jnp.float32),
                 jax.ShapeDtypeStruct((B, L), jnp.float32),
                 jax.ShapeDtypeStruct((B, L), jnp.float32))

    xrec_flat, mu, logvar = pl.pallas_call(
        _vae_fused_kernel,
        grid=(1,),
        in_specs=[_full_spec(a.shape) for a in args],
        out_specs=tuple(_full_spec(s.shape) for s in out_shape),
        out_shape=out_shape,
        compiler_params=pltpu.CompilerParams(
            dimension_semantics=("arbitrary",)),
    )(*args)

    return xrec_flat.reshape(B, nc, w, w), mu, logvar


# ----------------------------------------------------------------------------
# Exact dense folding of Conv2d / ConvTranspose2d (host-side, done once).
# Flattened index convention: c*H*W + h*W + w  (== torch .view order).
# ----------------------------------------------------------------------------
def _conv2d_as_dense(w, b, H, W, stride, pad):
    """nn.Conv2d, weight (Cout,Cin,K,K) -> dense (Cin*H*W, Cout*OH*OW)."""
    w = np.asarray(w, np.float32)
    Cout, Cin, K, _ = w.shape
    OH = (H + 2 * pad - K) // stride + 1
    OW = (W + 2 * pad - K) // stride + 1
    M = np.zeros((Cin * H * W, Cout * OH * OW), np.float32)
    ci = np.arange(Cin)
    co = np.arange(Cout)
    for kh in range(K):
        for kw in range(K):
            wt = w[:, :, kh, kw].T                      # (Cin, Cout)
            for oh in range(OH):
                ih = oh * stride + kh - pad
                if ih < 0 or ih >= H:
                    continue
                for ow in range(OW):
                    iw = ow * stride + kw - pad
                    if iw < 0 or iw >= W:
                        continue
                    M[np.ix_(ci * H * W + ih * W + iw,
                             co * OH * OW + oh * OW + ow)] += wt
    bias = (np.repeat(np.asarray(b, np.float32), OH * OW)
            if b is not None else np.zeros(Cout * OH * OW, np.float32))
    return M, bias, OH, OW


def _conv_transpose2d_as_dense(w, b, H, W, stride, pad):
    """nn.ConvTranspose2d, weight (Cin,Cout,K,K):
    out[co, ih*s+kh-p, iw*s+kw-p] += x[ci, ih, iw] * w[ci, co, kh, kw]."""
    w = np.asarray(w, np.float32)
    Cin, Cout, K, _ = w.shape
    OH = (H - 1) * stride - 2 * pad + K
    OW = (W - 1) * stride - 2 * pad + K
    M = np.zeros((Cin * H * W, Cout * OH * OW), np.float32)
    ci = np.arange(Cin)
    co = np.arange(Cout)
    for kh in range(K):
        for kw in range(K):
            wt = w[:, :, kh, kw]                        # (Cin, Cout)
            for ih in range(H):
                oh = ih * stride + kh - pad
                if oh < 0 or oh >= OH:
                    continue
                for iw in range(W):
                    ow = iw * stride + kw - pad
                    if ow < 0 or ow >= OW:
                        continue
                    M[np.ix_(ci * H * W + ih * W + iw,
                             co * OH * OW + oh * OW + ow)] += wt
    bias = (np.repeat(np.asarray(b, np.float32), OH * OW)
            if b is not None else np.zeros(Cout * OH * OW, np.float32))
    return M, bias, OH, OW


# ----------------------------------------------------------------------------
# Parameters (PyTorch layouts) and their dense-folded / bf16 kernel form.
# ----------------------------------------------------------------------------
def init_params(key, nc=1, ndf=8, latent_size=16, w=16):
    nb_blocks = int(np.log2(w)) - 3          # = 1 for w=16
    assert nb_blocks == 1, "script is configured for the single-block VAE"
    nf = ndf * 2
    wl = w // 2 ** (nb_blocks + 1)           # 4
    ks = jax.random.split(key, 6)
    p = {
        # encoder: Conv2d(nc, ndf, 4, 2, 1) ; Conv2d(ndf, 2*ndf, 4, 2, 1)
        "enc0_w": 0.1 * jax.random.normal(ks[0], (ndf, nc, 4, 4), jnp.float32),
        "enc0_b": jnp.zeros((ndf,), jnp.float32),
        "enc1_w": 0.1 * jax.random.normal(ks[1], (nf, ndf, 4, 4), jnp.float32),
        "enc1_b": jnp.zeros((nf,), jnp.float32),
        # latent: Linear(nf*wl*wl, 2*latent_size), stored (in, out)
        "lat_w": 0.1 * jax.random.normal(ks[2], (nf * wl * wl, 2 * latent_size), jnp.float32),
        "lat_b": jnp.zeros((2 * latent_size,), jnp.float32),
        # post_latent: Linear(latent_size, nf*wl*wl), stored (in, out)
        "post_w": 0.1 * jax.random.normal(ks[3], (latent_size, nf * wl * wl), jnp.float32),
        "post_b": jnp.zeros((nf * wl * wl,), jnp.float32),
        # decoder: ConvTranspose2d(2*ndf, ndf, 4, 2, 1) ; ConvTranspose2d(ndf, nc, 4, 2, 1, bias=False)
        "dec0_w": 0.1 * jax.random.normal(ks[4], (nf, ndf, 4, 4), jnp.float32),
        "dec0_b": jnp.zeros((ndf,), jnp.float32),
        "dec1_w": 0.1 * jax.random.normal(ks[5], (ndf, nc, 4, 4), jnp.float32),
    }
    cfg = dict(nc=nc, ndf=ndf, latent_size=latent_size, w=w, nf=nf, wl=wl)
    return p, cfg


def build_dense_params(p, cfg):
    nc, w, L = cfg["nc"], cfg["w"], cfg["latent_size"]
    nf, wl = cfg["nf"], cfg["wl"]

    we1, be1, h1, w1 = _conv2d_as_dense(p["enc0_w"], p["enc0_b"], w, w, 2, 1)
    we2, be2, h2, w2 = _conv2d_as_dense(p["enc1_w"], p["enc1_b"], h1, w1, 2, 1)
    wd1, bd1, h3, w3 = _conv_transpose2d_as_dense(p["dec0_w"], p["dec0_b"], wl, wl, 2, 1)
    wd2, _,   h4, w4 = _conv_transpose2d_as_dense(p["dec1_w"], None, h3, w3, 2, 1)
    assert (h2, w2) == (wl, wl) and (h4, w4) == (w, w)

    lat_w = np.asarray(p["lat_w"], np.float32)
    lat_b = np.asarray(p["lat_b"], np.float32)

    # Fold post_latent Linear into the first ConvTranspose2d (no activation
    # between them): d1_pre = (z @ Wpo + bpo) @ Wd1 + bd1
    #             == z @ (Wpo @ Wd1) + (bpo @ Wd1 + bd1)
    post_w = np.asarray(p["post_w"], np.float32)        # (L, nf*wl*wl)
    post_b = np.asarray(p["post_b"], np.float32)        # (nf*wl*wl,)
    wpd1 = post_w @ wd1                                 # (L, ndf*8*8), f32 fold
    bpd1 = post_b @ wd1 + bd1                           # (ndf*8*8,)

    as_w = lambda a: jnp.asarray(a, jnp.bfloat16)              # MXU operand dtype
    as_b = lambda a: jnp.asarray(a, jnp.float32).reshape(1, -1)  # f32 bias rows

    return {
        "we1": as_w(we1), "be1": as_b(be1),
        "we2": as_w(we2), "be2": as_b(be2),
        "wmu": as_w(lat_w[:, :L]), "bmu": as_b(lat_b[:L]),
        "wlv": as_w(lat_w[:, L:]), "blv": as_b(lat_b[L:]),
        "wpd1": as_w(wpd1), "bpd1": as_b(bpd1),
        "wd2": as_w(wd2),
    }


# ----------------------------------------------------------------------------
# Plain-JAX per-layer reference (lax.conv) for a numerical cross-check.
# Weights are rounded to bf16 to mirror the kernel's MXU operand precision.
# ----------------------------------------------------------------------------
def _bf16_round(a):
    return jnp.asarray(a, jnp.bfloat16).astype(jnp.float32)


def _conv2d_ref(x, w, b, stride, pad):
    y = jax.lax.conv_general_dilated(
        x, w, window_strides=(stride, stride),
        padding=[(pad, pad), (pad, pad)],
        dimension_numbers=("NCHW", "OIHW", "NCHW"))
    return y + b.reshape(1, -1, 1, 1)


def _conv_transpose2d_ref(x, w, b, stride, pad):
    K = w.shape[-1]
    w_eq = jnp.flip(w, axis=(2, 3)).transpose(1, 0, 2, 3)   # (Cout, Cin, K, K)
    y = jax.lax.conv_general_dilated(
        x, w_eq, window_strides=(1, 1),
        padding=[(K - 1 - pad, K - 1 - pad)] * 2,
        lhs_dilation=(stride, stride),
        dimension_numbers=("NCHW", "OIHW", "NCHW"))
    return y + b.reshape(1, -1, 1, 1)


def vae_forward_ref(x, p, cfg):
    B = x.shape[0]
    L, nf, wl, nc = cfg["latent_size"], cfg["nf"], cfg["wl"], cfg["nc"]
    h = _conv2d_ref(x, _bf16_round(p["enc0_w"]), p["enc0_b"], 2, 1)
    h = jnp.where(h >= 0, h, 0.2 * h)
    h = _conv2d_ref(h, _bf16_round(p["enc1_w"]), p["enc1_b"], 2, 1)
    h = jnp.where(h >= 0, h, 0.2 * h)
    hf = h.reshape(B, -1)
    lat = hf @ _bf16_round(p["lat_w"]) + p["lat_b"]
    mu, logvar = lat[:, :L], lat[:, L:]
    z = mu                                            # objective == 'ae'
    post = z @ _bf16_round(p["post_w"]) + p["post_b"]
    xd = post.reshape(B, nf, wl, wl)
    d = _conv_transpose2d_ref(xd, _bf16_round(p["dec0_w"]), p["dec0_b"], 2, 1)
    d = jnp.maximum(d, 0.0)
    zero_b = jnp.zeros((nc,), jnp.float32)
    xr = _conv_transpose2d_ref(d, _bf16_round(p["dec1_w"]), zero_b, 2, 1)
    return jax.nn.sigmoid(xr), mu, logvar


if __name__ == "__main__":
    key = jax.random.PRNGKey(0)
    k_param, k_x = jax.random.split(key)

    params, cfg = init_params(k_param, nc=1, ndf=8, latent_size=16, w=16)
    dense = build_dense_params(params, cfg)
    x = jax.random.normal(k_x, (2, cfg["nc"], cfg["w"], cfg["w"]), jnp.float32)

    fwd = jax.jit(lambda xx: vae_forward(xx, dense, cfg))
    xrec, mu, logvar = fwd(x)
    jax.block_until_ready((xrec, mu, logvar))

    # shape / range checks
    assert xrec.shape == (2, cfg["nc"], cfg["w"], cfg["w"]), xrec.shape
    assert mu.shape == (2, cfg["latent_size"]) and logvar.shape == (2, cfg["latent_size"])
    assert bool(jnp.all(jnp.isfinite(xrec)))
    assert bool(jnp.all((xrec >= 0.0) & (xrec <= 1.0)))   # sigmoid output range

    # numerical check against the per-layer plain-JAX reference
    xrec_r, mu_r, logvar_r = vae_forward_ref(x, params, cfg)
    np.testing.assert_allclose(np.asarray(mu), np.asarray(mu_r), atol=2e-2, rtol=0)
    np.testing.assert_allclose(np.asarray(logvar), np.asarray(logvar_r), atol=2e-2, rtol=0)
    np.testing.assert_allclose(np.asarray(xrec), np.asarray(xrec_r), atol=2e-2, rtol=0)

    print("KERNEL_OK")
</pallas_src>

<mosaic_0001>
module attributes {stable_mosaic.version = 11 : i64} {
  func.func @_vae_fused_kernel(%arg0: i32, %arg1: memref<2x256xbf16, #tpu.memory_space<vmem>>, %arg2: memref<256x512xbf16, #tpu.memory_space<vmem>>, %arg3: memref<1x512xf32, #tpu.memory_space<vmem>>, %arg4: memref<512x256xbf16, #tpu.memory_space<vmem>>, %arg5: memref<1x256xf32, #tpu.memory_space<vmem>>, %arg6: memref<256x16xbf16, #tpu.memory_space<vmem>>, %arg7: memref<1x16xf32, #tpu.memory_space<vmem>>, %arg8: memref<256x16xbf16, #tpu.memory_space<vmem>>, %arg9: memref<1x16xf32, #tpu.memory_space<vmem>>, %arg10: memref<16x512xbf16, #tpu.memory_space<vmem>>, %arg11: memref<1x512xf32, #tpu.memory_space<vmem>>, %arg12: memref<512x256xbf16, #tpu.memory_space<vmem>>, %arg13: memref<2x256xf32, #tpu.memory_space<vmem>>, %arg14: memref<2x16xf32, #tpu.memory_space<vmem>>, %arg15: memref<2x16xf32, #tpu.memory_space<vmem>>) attributes {dimension_semantics = [#tpu.dimension_semantics<arbitrary>], iteration_bounds = array<i64: 1>, scalar_prefetch = 0 : i64, scratch_operands = 0 : i64, tpu.core_type = #tpu.core_type<tc>, window_params = [{pipeline_mode = #tpu.pipeline_mode<synchronous>, transform_indices = @transform_0, window_bounds = array<i64: 2, 256>}, {pipeline_mode = #tpu.pipeline_mode<synchronous>, transform_indices = @transform_1, window_bounds = array<i64: 256, 512>}, {pipeline_mode = #tpu.pipeline_mode<synchronous>, transform_indices = @transform_2, window_bounds = array<i64: 1, 512>}, {pipeline_mode = #tpu.pipeline_mode<synchronous>, transform_indices = @transform_3, window_bounds = array<i64: 512, 256>}, {pipeline_mode = #tpu.pipeline_mode<synchronous>, transform_indices = @transform_4, window_bounds = array<i64: 1, 256>}, {pipeline_mode = #tpu.pipeline_mode<synchronous>, transform_indices = @transform_5, window_bounds = array<i64: 256, 16>}, {pipeline_mode = #tpu.pipeline_mode<synchronous>, transform_indices = @transform_6, window_bounds = array<i64: 1, 16>}, {pipeline_mode = #tpu.pipeline_mode<synchronous>, transform_indices = @transform_7, window_bounds = array<i64: 256, 16>}, {pipeline_mode = #tpu.pipeline_mode<synchronous>, transform_indices = @transform_8, window_bounds = array<i64: 1, 16>}, {pipeline_mode = #tpu.pipeline_mode<synchronous>, transform_indices = @transform_9, window_bounds = array<i64: 16, 512>}, {pipeline_mode = #tpu.pipeline_mode<synchronous>, transform_indices = @transform_10, window_bounds = array<i64: 1, 512>}, {pipeline_mode = #tpu.pipeline_mode<synchronous>, transform_indices = @transform_11, window_bounds = array<i64: 512, 256>}, {pipeline_mode = #tpu.pipeline_mode<synchronous>, transform_indices = @transform_12, window_bounds = array<i64: 2, 256>}, {pipeline_mode = #tpu.pipeline_mode<synchronous>, transform_indices = @transform_13, window_bounds = array<i64: 2, 16>}, {pipeline_mode = #tpu.pipeline_mode<synchronous>, transform_indices = @transform_14, window_bounds = array<i64: 2, 16>}]} {
    %c0 = arith.constant 0 : index
    %c0_0 = arith.constant 0 : index
    %0 = vector.load %arg1[%c0, %c0_0] : memref<2x256xbf16, #tpu.memory_space<vmem>>, vector<2x256xbf16>
    %c0_1 = arith.constant 0 : index
    %c0_2 = arith.constant 0 : index
    %1 = vector.load %arg2[%c0_1, %c0_2] : memref<256x512xbf16, #tpu.memory_space<vmem>>, vector<256x512xbf16>
    %cst = arith.constant dense<0.000000e+00> : vector<2x512xf32>
    %2 = tpu.matmul %0, %1, %cst {dimension_numbers = #tpu.dot_dimension_numbers<[1], [0], [0], [1], [0, 0, 1, 1], [], []>} : vector<2x256xbf16>, vector<256x512xbf16>, vector<2x512xf32> -> vector<2x512xf32>
    %c0_3 = arith.constant 0 : index
    %c0_4 = arith.constant 0 : index
    %3 = vector.load %arg3[%c0_3, %c0_4] : memref<1x512xf32, #tpu.memory_space<vmem>>, vector<1x512xf32>
    %4 = vector.broadcast %3 : vector<1x512xf32> to vector<2x512xf32>
    %5 = arith.addf %2, %4 : vector<2x512xf32>
    %cst_5 = arith.constant 0.000000e+00 : f32
    %6 = vector.broadcast %cst_5 : f32 to vector<2x512xf32>
    %7 = arith.cmpf oge, %5, %6 : vector<2x512xf32>
    %cst_6 = arith.constant 2.000000e-01 : f32
    %8 = vector.broadcast %cst_6 : f32 to vector<2x512xf32>
    %9 = arith.mulf %8, %5 : vector<2x512xf32>
    %10 = arith.select %7, %5, %9 : vector<2x512xi1>, vector<2x512xf32>
    %11 = arith.truncf %10 : vector<2x512xf32> to vector<2x512xbf16>
    %c0_7 = arith.constant 0 : index
    %c0_8 = arith.constant 0 : index
    %12 = vector.load %arg4[%c0_7, %c0_8] : memref<512x256xbf16, #tpu.memory_space<vmem>>, vector<512x256xbf16>
    %cst_9 = arith.constant dense<0.000000e+00> : vector<2x256xf32>
    %13 = tpu.matmul %11, %12, %cst_9 {dimension_numbers = #tpu.dot_dimension_numbers<[1], [0], [0], [1], [0, 0, 1, 1], [], []>} : vector<2x512xbf16>, vector<512x256xbf16>, vector<2x256xf32> -> vector<2x256xf32>
    %c0_10 = arith.constant 0 : index
    %c0_11 = arith.constant 0 : index
    %14 = vector.load %arg5[%c0_10, %c0_11] : memref<1x256xf32, #tpu.memory_space<vmem>>, vector<1x256xf32>
    %15 = vector.broadcast %14 : vector<1x256xf32> to vector<2x256xf32>
    %16 = arith.addf %13, %15 : vector<2x256xf32>
    %cst_12 = arith.constant 0.000000e+00 : f32
    %17 = vector.broadcast %cst_12 : f32 to vector<2x256xf32>
    %18 = arith.cmpf oge, %16, %17 : vector<2x256xf32>
    %cst_13 = arith.constant 2.000000e-01 : f32
    %19 = vector.broadcast %cst_13 : f32 to vector<2x256xf32>
    %20 = arith.mulf %19, %16 : vector<2x256xf32>
    %21 = arith.select %18, %16, %20 : vector<2x256xi1>, vector<2x256xf32>
    %22 = arith.truncf %21 : vector<2x256xf32> to vector<2x256xbf16>
    %c0_14 = arith.constant 0 : index
    %c0_15 = arith.constant 0 : index
    %23 = vector.load %arg6[%c0_14, %c0_15] : memref<256x16xbf16, #tpu.memory_space<vmem>>, vector<256x16xbf16>
    %cst_16 = arith.constant dense<0.000000e+00> : vector<2x16xf32>
    %24 = tpu.matmul %22, %23, %cst_16 {dimension_numbers = #tpu.dot_dimension_numbers<[1], [0], [0], [1], [0, 0, 1, 1], [], []>} : vector<2x256xbf16>, vector<256x16xbf16>, vector<2x16xf32> -> vector<2x16xf32>
    %c0_17 = arith.constant 0 : index
    %c0_18 = arith.constant 0 : index
    %25 = vector.load %arg7[%c0_17, %c0_18] : memref<1x16xf32, #tpu.memory_space<vmem>>, vector<1x16xf32>
    %26 = vector.broadcast %25 : vector<1x16xf32> to vector<2x16xf32>
    %27 = arith.addf %24, %26 : vector<2x16xf32>
    %28 = arith.truncf %21 : vector<2x256xf32> to vector<2x256xbf16>
    %c0_19 = arith.constant 0 : index
    %c0_20 = arith.constant 0 : index
    %29 = vector.load %arg8[%c0_19, %c0_20] : memref<256x16xbf16, #tpu.memory_space<vmem>>, vector<256x16xbf16>
    %cst_21 = arith.constant dense<0.000000e+00> : vector<2x16xf32>
    %30 = tpu.matmul %28, %29, %cst_21 {dimension_numbers = #tpu.dot_dimension_numbers<[1], [0], [0], [1], [0, 0, 1, 1], [], []>} : vector<2x256xbf16>, vector<256x16xbf16>, vector<2x16xf32> -> vector<2x16xf32>
    %c0_22 = arith.constant 0 : index
    %c0_23 = arith.constant 0 : index
    %31 = vector.load %arg9[%c0_22, %c0_23] : memref<1x16xf32, #tpu.memory_space<vmem>>, vector<1x16xf32>
    %32 = vector.broadcast %31 : vector<1x16xf32> to vector<2x16xf32>
    %33 = arith.addf %30, %32 : vector<2x16xf32>
    %c0_24 = arith.constant 0 : index
    %c0_25 = arith.constant 0 : index
    %34 = vector.load %arg14[%c0_24, %c0_25] : memref<2x16xf32, #tpu.memory_space<vmem>>, vector<2x16xf32>
    tpu.vector_store %arg14[%c0_24, %c0_25], %27 {strides = array<i32>} : memref<2x16xf32, #tpu.memory_space<vmem>>, vector<2x16xf32>,
    %c0_26 = arith.constant 0 : index
    %c0_27 = arith.constant 0 : index
    %35 = vector.load %arg15[%c0_26, %c0_27] : memref<2x16xf32, #tpu.memory_space<vmem>>, vector<2x16xf32>
    tpu.vector_store %arg15[%c0_26, %c0_27], %33 {strides = array<i32>} : memref<2x16xf32, #tpu.memory_space<vmem>>, vector<2x16xf32>,
    %36 = arith.truncf %27 : vector<2x16xf32> to vector<2x16xbf16>
    %c0_28 = arith.constant 0 : index
    %c0_29 = arith.constant 0 : index
    %37 = vector.load %arg10[%c0_28, %c0_29] : memref<16x512xbf16, #tpu.memory_space<vmem>>, vector<16x512xbf16>
    %cst_30 = arith.constant dense<0.000000e+00> : vector<2x512xf32>
    %38 = tpu.matmul %36, %37, %cst_30 {dimension_numbers = #tpu.dot_dimension_numbers<[1], [0], [0], [1], [0, 0, 1, 1], [], []>} : vector<2x16xbf16>, vector<16x512xbf16>, vector<2x512xf32> -> vector<2x512xf32>
    %c0_31 = arith.constant 0 : index
    %c0_32 = arith.constant 0 : index
    %39 = vector.load %arg11[%c0_31, %c0_32] : memref<1x512xf32, #tpu.memory_space<vmem>>, vector<1x512xf32>
    %40 = vector.broadcast %39 : vector<1x512xf32> to vector<2x512xf32>
    %41 = arith.addf %38, %40 : vector<2x512xf32>
    %cst_33 = arith.constant 0.000000e+00 : f32
    %42 = vector.broadcast %cst_33 : f32 to vector<2x512xf32>
    %43 = arith.maximumf %41, %42 : vector<2x512xf32>
    %44 = arith.truncf %43 : vector<2x512xf32> to vector<2x512xbf16>
    %c0_34 = arith.constant 0 : index
    %c0_35 = arith.constant 0 : index
    %45 = vector.load %arg12[%c0_34, %c0_35] : memref<512x256xbf16, #tpu.memory_space<vmem>>, vector<512x256xbf16>
    %cst_36 = arith.constant dense<0.000000e+00> : vector<2x256xf32>
    %46 = tpu.matmul %44, %45, %cst_36 {dimension_numbers = #tpu.dot_dimension_numbers<[1], [0], [0], [1], [0, 0, 1, 1], [], []>} : vector<2x512xbf16>, vector<512x256xbf16>, vector<2x256xf32> -> vector<2x256xf32>
    %cst_37 = arith.constant 0.000000e+00 : f32
    %47 = vector.broadcast %cst_37 : f32 to vector<2x256xf32>
    %48 = arith.subf %47, %46 : vector<2x256xf32>
    %49 = math.exp %48 : vector<2x256xf32>
    %cst_38 = arith.constant 1.000000e+00 : f32
    %50 = vector.broadcast %cst_38 : f32 to vector<2x256xf32>
    %51 = arith.addf %50, %49 : vector<2x256xf32>
    %52 = tpu.reciprocal %51 {approx = true} : vector<2x256xf32> -> vector<2x256xf32>
    %cst_39 = arith.constant 0.000000e+00 : f32
    %cst_40 = arith.constant 1.000000e+00 : f32
    %53 = vector.broadcast %cst_39 : f32 to vector<2x256xf32>
    %54 = arith.maximumf %53, %52 : vector<2x256xf32>
    %55 = vector.broadcast %cst_40 : f32 to vector<2x256xf32>
    %56 = arith.minimumf %55, %54 : vector<2x256xf32>
    %c0_41 = arith.constant 0 : index
    %c0_42 = arith.constant 0 : index
    %57 = vector.load %arg13[%c0_41, %c0_42] : memref<2x256xf32, #tpu.memory_space<vmem>>, vector<2x256xf32>
    tpu.vector_store %arg13[%c0_41, %c0_42], %56 {strides = array<i32>} : memref<2x256xf32, #tpu.memory_space<vmem>>, vector<2x256xf32>,
    return
  }
  func.func @transform_0(%arg0: i32) -> (i32, i32) {
    %c0_i32 = arith.constant 0 : i32
    %c0_i32_0 = arith.constant 0 : i32
    %c0_i32_1 = arith.constant 0 : i32
    return %c0_i32, %c0_i32_0 : i32, i32
  }
  func.func @transform_1(%arg0: i32) -> (i32, i32) {
    %c0_i32 = arith.constant 0 : i32
    %c0_i32_0 = arith.constant 0 : i32
    %c0_i32_1 = arith.constant 0 : i32
    return %c0_i32, %c0_i32_0 : i32, i32
  }
  func.func @transform_2(%arg0: i32) -> (i32, i32) {
    %c0_i32 = arith.constant 0 : i32
    %c0_i32_0 = arith.constant 0 : i32
    %c0_i32_1 = arith.constant 0 : i32
    return %c0_i32, %c0_i32_0 : i32, i32
  }
  func.func @transform_3(%arg0: i32) -> (i32, i32) {
    %c0_i32 = arith.constant 0 : i32
    %c0_i32_0 = arith.constant 0 : i32
    %c0_i32_1 = arith.constant 0 : i32
    return %c0_i32, %c0_i32_0 : i32, i32
  }
  func.func @transform_4(%arg0: i32) -> (i32, i32) {
    %c0_i32 = arith.constant 0 : i32
    %c0_i32_0 = arith.constant 0 : i32
    %c0_i32_1 = arith.constant 0 : i32
    return %c0_i32, %c0_i32_0 : i32, i32
  }
  func.func @transform_5(%arg0: i32) -> (i32, i32) {
    %c0_i32 = arith.constant 0 : i32
    %c0_i32_0 = arith.constant 0 : i32
    %c0_i32_1 = arith.constant 0 : i32
    return %c0_i32, %c0_i32_0 : i32, i32
  }
  func.func @transform_6(%arg0: i32) -> (i32, i32) {
    %c0_i32 = arith.constant 0 : i32
    %c0_i32_0 = arith.constant 0 : i32
    %c0_i32_1 = arith.constant 0 : i32
    return %c0_i32, %c0_i32_0 : i32, i32
  }
  func.func @transform_7(%arg0: i32) -> (i32, i32) {
    %c0_i32 = arith.constant 0 : i32
    %c0_i32_0 = arith.constant 0 : i32
    %c0_i32_1 = arith.constant 0 : i32
    return %c0_i32, %c0_i32_0 : i32, i32
  }
  func.func @transform_8(%arg0: i32) -> (i32, i32) {
    %c0_i32 = arith.constant 0 : i32
    %c0_i32_0 = arith.constant 0 : i32
    %c0_i32_1 = arith.constant 0 : i32
    return %c0_i32, %c0_i32_0 : i32, i32
  }
  func.func @transform_9(%arg0: i32) -> (i32, i32) {
    %c0_i32 = arith.constant 0 : i32
    %c0_i32_0 = arith.constant 0 : i32
    %c0_i32_1 = arith.constant 0 : i32
    return %c0_i32, %c0_i32_0 : i32, i32
  }
  func.func @transform_10(%arg0: i32) -> (i32, i32) {
    %c0_i32 = arith.constant 0 : i32
    %c0_i32_0 = arith.constant 0 : i32
    %c0_i32_1 = arith.constant 0 : i32
    return %c0_i32, %c0_i32_0 : i32, i32
  }
  func.func @transform_11(%arg0: i32) -> (i32, i32) {
    %c0_i32 = arith.constant 0 : i32
    %c0_i32_0 = arith.constant 0 : i32
    %c0_i32_1 = arith.constant 0 : i32
    return %c0_i32, %c0_i32_0 : i32, i32
  }
  func.func @transform_12(%arg0: i32) -> (i32, i32) {
    %c0_i32 = arith.constant 0 : i32
    %c0_i32_0 = arith.constant 0 : i32
    %c0_i32_1 = arith.constant 0 : i32
    return %c0_i32, %c0_i32_0 : i32, i32
  }
  func.func @transform_13(%arg0: i32) -> (i32, i32) {
    %c0_i32 = arith.constant 0 : i32
    %c0_i32_0 = arith.constant 0 : i32
    %c0_i32_1 = arith.constant 0 : i32
    return %c0_i32, %c0_i32_0 : i32, i32
  }
  func.func @transform_14(%arg0: i32) -> (i32, i32) {
    %c0_i32 = arith.constant 0 : i32
    %c0_i32_0 = arith.constant 0 : i32
    %c0_i32_1 = arith.constant 0 : i32
    return %c0_i32, %c0_i32_0 : i32, i32
  }
}

</mosaic_0001>

<llo_original>
// kernel: _lambda_.1
$region0: #{_lambda_.1}
  #allocation0 [shape = 'u32[]', space=smem, size = 0x4, offset = 0x4, fixed_abs, tag = 'smem constant byte address 0x4 - core index']
  #allocation1 [shape = 'u32[72,128]{1,0:T(1,128)}', space=vmem, size = 0x9000, scoped, tag = 'internal scratch']
  %s0 = inlined_call_operand.vmem [shape: bf16[2,256], index: 0, kind: input, shape index: {}]
  %s1 = inlined_call_operand.hbm [shape: bf16[256,512], index: 1, kind: input, shape index: {}]
  %s2 = inlined_call_operand.vmem [shape: f32[1,512], index: 2, kind: input, shape index: {}, may-alias: {2,10}]
  %s3 = inlined_call_operand.hbm [shape: bf16[512,256], index: 3, kind: input, shape index: {}]
  %s4 = inlined_call_operand.vmem [shape: f32[1,256], index: 4, kind: input, shape index: {}]
  %s5 = inlined_call_operand.hbm [shape: bf16[256,16], index: 5, kind: input, shape index: {}]
  %s6 = inlined_call_operand.vmem [shape: f32[1,16], index: 6, kind: input, shape index: {}, may-alias: {6,8}]
  %s7 = inlined_call_operand.hbm [shape: bf16[256,16], index: 7, kind: input, shape index: {}]
  %s8 = inlined_call_operand.vmem [shape: f32[1,16], index: 8, kind: input, shape index: {}, may-alias: {6,8}]
  %s9 = inlined_call_operand.vmem [shape: bf16[16,512], index: 9, kind: input, shape index: {}]
  %s10 = inlined_call_operand.vmem [shape: f32[1,512], index: 10, kind: input, shape index: {}, may-alias: {2,10}]
  %s11 = inlined_call_operand.hbm [shape: bf16[512,256], index: 11, kind: input, shape index: {}]
  %s12 = inlined_call_operand.vmem [shape: f32[2,256], index: 12, kind: output, shape index: {0}]
  %s13 = inlined_call_operand.hbm [shape: f32[2,16], index: 13, kind: output, shape index: {1}]
  %s14 = inlined_call_operand.hbm [shape: f32[2,16], index: 14, kind: output, shape index: {2}]
  %15 = xla_tuple %s12, %s13, %s14
  %s16 = sld [smem:[#allocation0]]
  $region94: #{_lambda_.1} parent=0
    _
  %s18 = ssub.s32 1, %s16
  %s19 = scalar_select 0, %s18, %s16
  $region1: #{_lambda_.1} parent=0
    #allocation2 [shape = 'u8[262144]{0}', space=vmem, size = 0x40000, scoped, tag = 'input window, operand 1, single buffered']
    #allocation3 [shape = 's32[1]{0}', space=sflag, size = 0x4, scoped, tag = 'scoped memory for _lambda_.1']
    #allocation4 [shape = 's32[1]{0}', space=sflag, size = 0x4, scoped, tag = 'scoped memory for _lambda_.1']
    #allocation5 [shape = 'u8[262144]{0}', space=vmem, size = 0x40000, scoped, tag = 'input window, operand 3, single buffered']
    #allocation6 [shape = 's32[1]{0}', space=sflag, size = 0x4, scoped, tag = 'scoped memory for _lambda_.1']
    #allocation7 [shape = 'u8[65536]{0}', space=vmem, size = 0x10000, scoped, tag = 'input window, operand 5, single buffered']
    #allocation8 [shape = 'u8[65536]{0}', space=vmem, size = 0x10000, scoped, tag = 'input window, operand 7, single buffered']
    #allocation9 [shape = 's32[1]{0}', space=sflag, size = 0x4, scoped, tag = 'scoped memory for _lambda_.1']
    #allocation10 [shape = 'u8[262144]{0}', space=vmem, size = 0x40000, scoped, tag = 'input window, operand 11, single buffered']
    #allocation11 [shape = 'u8[1024]{0}', space=vmem, size = 0x400, scoped, tag = 'output window, operand 1, single buffered']
    #allocation12 [shape = 'u8[1024]{0}', space=vmem, size = 0x400, scoped, tag = 'output window, operand 2, single buffered']
    #allocation13 [shape = 's32[1]{0}', space=sflag, size = 0x4, scoped, tag = 'scoped memory for _lambda_.1']
    %20 = vsyncpa [#allocation3], 0
    %21 = vsyncpa [#allocation6], 0
    %22 = vsyncpa [#allocation9], 0
    %23 = vsyncpa [#allocation4], 0
    %24 = vsyncpa [#allocation13], 0
    // Predicated region
    $region2: #{_lambda_.1} parent=1 // pred_check
      _
    $region3: #{_lambda_.1} parent=1 // pred_check_branch
      %26 = sbr.rel (0) target = $region5
    $region4: #{_lambda_.1} parent=1 // pred_region
      _
    $region5: #{_lambda_.1} parent=1 // pred_fallthru
      _
    // Predicated region
    $region6: #{_lambda_.1} parent=1 // pred_check
      _
    $region7: #{_lambda_.1} parent=1 // pred_check_branch
      %28 = sbr.rel (0) target = $region9
    $region8: #{_lambda_.1} parent=1 // pred_region
      %30 = vsyncadd [#allocation3], 0
      %s31 = sshll.u32 %s1, 4
      %s32 = int_to_ptr.hbm [resolvable:$true] %s31
      %s33 = sshll.u32 [#allocation2], 4
      %s34 = int_to_ptr.vmem [resolvable:$true] %s33
      %39 = dma.hbm_to_vmem [thread:$0]  %s32, 8192, %s34, [#allocation3], 256, 256, 16
    $region9: #{_lambda_.1} parent=1 // pred_fallthru
      _
    // Predicated region
    $region10: #{_lambda_.1} parent=1 // pred_check
      _
    $region11: #{_lambda_.1} parent=1 // pred_check_branch
      %41 = sbr.rel (0) target = $region13
    $region12: #{_lambda_.1} parent=1 // pred_region
      _
    $region13: #{_lambda_.1} parent=1 // pred_fallthru
      _
    // Predicated region
    $region14: #{_lambda_.1} parent=1 // pred_check
      _
    $region15: #{_lambda_.1} parent=1 // pred_check_branch
      %43 = sbr.rel (0) target = $region17
    $region16: #{_lambda_.1} parent=1 // pred_region
      %45 = vsyncadd [#allocation6], 0
      %s46 = sshll.u32 %s3, 4
      %s47 = int_to_ptr.hbm [resolvable:$true] %s46
      %s48 = sshll.u32 [#allocation5], 4
      %s49 = int_to_ptr.vmem [resolvable:$true] %s48
      %54 = dma.hbm_to_vmem [thread:$0]  %s47, 8192, %s49, [#allocation6], 128, 128, 8
    $region17: #{_lambda_.1} parent=1 // pred_fallthru
      _
    // Predicated region
    $region18: #{_lambda_.1} parent=1 // pred_check
      _
    $region19: #{_lambda_.1} parent=1 // pred_check_branch
      %56 = sbr.rel (0) target = $region21
    $region20: #{_lambda_.1} parent=1 // pred_region
      _
    $region21: #{_lambda_.1} parent=1 // pred_fallthru
      _
    // Predicated region
    $region22: #{_lambda_.1} parent=1 // pred_check
      _
    $region23: #{_lambda_.1} parent=1 // pred_check_branch
      %58 = sbr.rel (0) target = $region25
    $region24: #{_lambda_.1} parent=1 // pred_region
      %60 = vsyncadd [#allocation6], 0
      %s61 = sshll.u32 %s5, 4
      %s62 = int_to_ptr.hbm [resolvable:$true] %s61
      %s63 = sshll.u32 [#allocation7], 4
      %s64 = int_to_ptr.vmem [resolvable:$true] %s63
      %69 = dma.hbm_to_vmem [thread:$0]  %s62, 2048, %s64, [#allocation6], 64, 64, 4
    $region25: #{_lambda_.1} parent=1 // pred_fallthru
      _
    // Predicated region
    $region26: #{_lambda_.1} parent=1 // pred_check
      _
    $region27: #{_lambda_.1} parent=1 // pred_check_branch
      %71 = sbr.rel (0) target = $region29
    $region28: #{_lambda_.1} parent=1 // pred_region
      _
    $region29: #{_lambda_.1} parent=1 // pred_fallthru
      _
    // Predicated region
    $region30: #{_lambda_.1} parent=1 // pred_check
      _
    $region31: #{_lambda_.1} parent=1 // pred_check_branch
      %73 = sbr.rel (0) target = $region33
    $region32: #{_lambda_.1} parent=1 // pred_region
      %75 = vsyncadd [#allocation9], 0
      %s76 = sshll.u32 %s7, 4
      %s77 = int_to_ptr.hbm [resolvable:$true] %s76
      %s78 = sshll.u32 [#allocation8], 4
      %s79 = int_to_ptr.vmem [resolvable:$true] %s78
      %84 = dma.hbm_to_vmem [thread:$0]  %s77, 2048, %s79, [#allocation9], 64, 64, 4
    $region33: #{_lambda_.1} parent=1 // pred_fallthru
      _
    // Predicated region
    $region34: #{_lambda_.1} parent=1 // pred_check
      _
    $region35: #{_lambda_.1} parent=1 // pred_check_branch
      %86 = sbr.rel (0) target = $region37
    $region36: #{_lambda_.1} parent=1 // pred_region
      _
    $region37: #{_lambda_.1} parent=1 // pred_fallthru
      _
    // Predicated region
    $region38: #{_lambda_.1} parent=1 // pred_check
      _
    $region39: #{_lambda_.1} parent=1 // pred_check_branch
      %88 = sbr.rel (0) target = $region41
    $region40: #{_lambda_.1} parent=1 // pred_region
      _
    $region41: #{_lambda_.1} parent=1 // pred_fallthru
      _
    // Predicated region
    $region42: #{_lambda_.1} parent=1 // pred_check
      _
    $region43: #{_lambda_.1} parent=1 // pred_check_branch
      %90 = sbr.rel (0) target = $region45
    $region44: #{_lambda_.1} parent=1 // pred_region
      _
    $region45: #{_lambda_.1} parent=1 // pred_fallthru
      _
    // Predicated region
    $region46: #{_lambda_.1} parent=1 // pred_check
      _
    $region47: #{_lambda_.1} parent=1 // pred_check_branch
      %92 = sbr.rel (0) target = $region49
    $region48: #{_lambda_.1} parent=1 // pred_region
      %94 = vsyncadd [#allocation9], 0
      %s95 = sshll.u32 %s11, 4
      %s96 = int_to_ptr.hbm [resolvable:$true] %s95
      %s97 = sshll.u32 [#allocation10], 4
      %s98 = int_to_ptr.vmem [resolvable:$true] %s97
      %103 = dma.hbm_to_vmem [thread:$0]  %s96, 8192, %s98, [#allocation9], 128, 128, 8
    $region49: #{_lambda_.1} parent=1 // pred_fallthru
      _
    // Predicated region
    $region50: #{_lambda_.1} parent=1 // pred_check
      _
    $region51: #{_lambda_.1} parent=1 // pred_check_branch
      %105 = sbr.rel (0) target = $region53
    $region52: #{_lambda_.1} parent=1 // pred_region
      %107 = dma.done [#allocation3], 8192
    $region53: #{_lambda_.1} parent=1 // pred_fallthru
      _
    // Predicated region
    $region54: #{_lambda_.1} parent=1 // pred_check
      _
    $region55: #{_lambda_.1} parent=1 // pred_check_branch
      %109 = sbr.rel (0) target = $region57
    $region56: #{_lambda_.1} parent=1 // pred_region
      %111 = dma.done [#allocation6], 8192
    $region57: #{_lambda_.1} parent=1 // pred_fallthru
      _
    // Predicated region
    $region58: #{_lambda_.1} parent=1 // pred_check
      _
    $region59: #{_lambda_.1} parent=1 // pred_check_branch
      %113 = sbr.rel (0) target = $region61
    $region60: #{_lambda_.1} parent=1 // pred_region
      %115 = dma.done [#allocation6], 2048
    $region61: #{_lambda_.1} parent=1 // pred_fallthru
      _
    // Predicated region
    $region62: #{_lambda_.1} parent=1 // pred_check
      _
    $region63: #{_lambda_.1} parent=1 // pred_check_branch
      %117 = sbr.rel (0) target = $region65
    $region64: #{_lambda_.1} parent=1 // pred_region
      %119 = dma.done [#allocation9], 2048
    $region65: #{_lambda_.1} parent=1 // pred_fallthru
      _
    // Predicated region
    $region66: #{_lambda_.1} parent=1 // pred_check
      _
    $region67: #{_lambda_.1} parent=1 // pred_check_branch
      %121 = sbr.rel (0) target = $region69
    $region68: #{_lambda_.1} parent=1 // pred_region
      %123 = dma.done [#allocation9], 8192
    $region69: #{_lambda_.1} parent=1 // pred_fallthru
      _
    %v125 = vld [vmem:[%s0] sm:$0x3]
    %v126 = vld [vmem:[#allocation2] sm:$0xff]
    %v127 = vld [vmem:[#allocation2 + $0x8] sm:$0xff]
    %v128 = vld [vmem:[#allocation2 + $0x10] sm:$0xff]
    %v129 = vld [vmem:[#allocation2 + $0x18] sm:$0xff]
    %v130 = vld [vmem:[#allocation2 + $0x20] sm:$0xff]
    %v131 = vld [vmem:[#allocation2 + $0x28] sm:$0xff]
    %v132 = vld [vmem:[#allocation2 + $0x30] sm:$0xff]
    %v133 = vld [vmem:[#allocation2 + $0x38] sm:$0xff]
    %v134 = vld [vmem:[#allocation2 + $0x40] sm:$0xff]
    %v135 = vld [vmem:[#allocation2 + $0x48] sm:$0xff]
    %v136 = vld [vmem:[#allocation2 + $0x50] sm:$0xff]
    %v137 = vld [vmem:[#allocation2 + $0x58] sm:$0xff]
    %v138 = vld [vmem:[#allocation2 + $0x60] sm:$0xff]
    %v139 = vld [vmem:[#allocation2 + $0x68] sm:$0xff]
    %v140 = vld [vmem:[#allocation2 + $0x70] sm:$0xff]
    %v141 = vld [vmem:[#allocation2 + $0x78] sm:$0xff]
    %v142 = vld [vmem:[#allocation2 + $0x80] sm:$0xff]
    %v143 = vld [vmem:[#allocation2 + $0x88] sm:$0xff]
    %v144 = vld [vmem:[#allocation2 + $0x90] sm:$0xff]
    %v145 = vld [vmem:[#allocation2 + $0x98] sm:$0xff]
    %v146 = vld [vmem:[#allocation2 + $0xa0] sm:$0xff]
    %v147 = vld [vmem:[#allocation2 + $0xa8] sm:$0xff]
    %v148 = vld [vmem:[#allocation2 + $0xb0] sm:$0xff]
    %v149 = vld [vmem:[#allocation2 + $0xb8] sm:$0xff]
    %v150 = vld [vmem:[#allocation2 + $0xc0] sm:$0xff]
    %v151 = vld [vmem:[#allocation2 + $0xc8] sm:$0xff]
    %v152 = vld [vmem:[#allocation2 + $0xd0] sm:$0xff]
    %v153 = vld [vmem:[#allocation2 + $0xd8] sm:$0xff]
    %v154 = vld [vmem:[#allocation2 + $0xe0] sm:$0xff]
    %v155 = vld [vmem:[#allocation2 + $0xe8] sm:$0xff]
    %v156 = vld [vmem:[#allocation2 + $0xf0] sm:$0xff]
    %v157 = vld [vmem:[#allocation2 + $0xf8] sm:$0xff]
    %v158 = vld [vmem:[#allocation2 + $0x100] sm:$0xff]
    %v159 = vld [vmem:[#allocation2 + $0x108] sm:$0xff]
    %v160 = vld [vmem:[#allocation2 + $0x110] sm:$0xff]
    %v161 = vld [vmem:[#allocation2 + $0x118] sm:$0xff]
    %v162 = vld [vmem:[#allocation2 + $0x120] sm:$0xff]
    %v163 = vld [vmem:[#allocation2 + $0x128] sm:$0xff]
    %v164 = vld [vmem:[#allocation2 + $0x130] sm:$0xff]
    %v165 = vld [vmem:[#allocation2 + $0x138] sm:$0xff]
    %v166 = vld [vmem:[#allocation2 + $0x140] sm:$0xff]
    %v167 = vld [vmem:[#allocation2 + $0x148] sm:$0xff]
    %v168 = vld [vmem:[#allocation2 + $0x150] sm:$0xff]
    %v169 = vld [vmem:[#allocation2 + $0x158] sm:$0xff]
    %v170 = vld [vmem:[#allocation2 + $0x160] sm:$0xff]
    %v171 = vld [vmem:[#allocation2 + $0x168] sm:$0xff]
    %v172 = vld [vmem:[#allocation2 + $0x170] sm:$0xff]
    %v173 = vld [vmem:[#allocation2 + $0x178] sm:$0xff]
    %v174 = vld [vmem:[#allocation2 + $0x180] sm:$0xff]
    %v175 = vld [vmem:[#allocation2 + $0x188] sm:$0xff]
    %v176 = vld [vmem:[#allocation2 + $0x190] sm:$0xff]
    %v177 = vld [vmem:[#allocation2 + $0x198] sm:$0xff]
    %v178 = vld [vmem:[#allocation2 + $0x1a0] sm:$0xff]
    %v179 = vld [vmem:[#allocation2 + $0x1a8] sm:$0xff]
    %v180 = vld [vmem:[#allocation2 + $0x1b0] sm:$0xff]
    %v181 = vld [vmem:[#allocation2 + $0x1b8] sm:$0xff]
    %v182 = vld [vmem:[#allocation2 + $0x1c0] sm:$0xff]
    %v183 = vld [vmem:[#allocation2 + $0x1c8] sm:$0xff]
    %v184 = vld [vmem:[#allocation2 + $0x1d0] sm:$0xff]
    %v185 = vld [vmem:[#allocation2 + $0x1d8] sm:$0xff]
    %v186 = vld [vmem:[#allocation2 + $0x1e0] sm:$0xff]
    %v187 = vld [vmem:[#allocation2 + $0x1e8] sm:$0xff]
    %v188 = vld [vmem:[#allocation2 + $0x1f0] sm:$0xff]
    %v189 = vld [vmem:[#allocation2 + $0x1f8] sm:$0xff]
    %v190 = vld [vmem:[%s2] sm:$0xf]
    %v192 = vperm.slane %v190, 0
    %v193 = vperm.slane %v190, 1
    %v194 = vperm.slane %v190, 2
    %v195 = vperm.slane %v190, 3
    %201 = vst [vmem:[#allocation1] ss:$9 sm:$0xff] %v125
    %v202 = vld [vmem:[#allocation1] sm:$0xff]
    %v203 = vld [vmem:[#allocation1 + $0x9] sm:$0xff]
    %v270 = vunpack.c.l.b16 %v126
    %v271 = vunpack.c.h.b16 %v126
    %v272 = vunpack.c.l.b16 %v127
    %v273 = vunpack.c.h.b16 %v127
    %v274 = vunpack.c.l.b16 %v128
    %v275 = vunpack.c.h.b16 %v128
    %v276 = vunpack.c.l.b16 %v129
    %v277 = vunpack.c.h.b16 %v129
    %v278 = vunpack.c.l.b16 %v130
    %v279 = vunpack.c.h.b16 %v130
    %v280 = vunpack.c.l.b16 %v131
    %v281 = vunpack.c.h.b16 %v131
    %v282 = vunpack.c.l.b16 %v132
    %v283 = vunpack.c.h.b16 %v132
    %v284 = vunpack.c.l.b16 %v133
    %v285 = vunpack.c.h.b16 %v133
    %v286 = vunpack.c.l.b16 %v134
    %v287 = vunpack.c.h.b16 %v134
    %v288 = vunpack.c.l.b16 %v135
    %v289 = vunpack.c.h.b16 %v135
    %v290 = vunpack.c.l.b16 %v136
    %v291 = vunpack.c.h.b16 %v136
    %v292 = vunpack.c.l.b16 %v137
    %v293 = vunpack.c.h.b16 %v137
    %v294 = vunpack.c.l.b16 %v138
    %v295 = vunpack.c.h.b16 %v138
    %v296 = vunpack.c.l.b16 %v139
    %v297 = vunpack.c.h.b16 %v139
    %v298 = vunpack.c.l.b16 %v140
    %v299 = vunpack.c.h.b16 %v140
    %v300 = vunpack.c.l.b16 %v141
    %v301 = vunpack.c.h.b16 %v141
    %v302 = vunpack.c.l.b16 %v142
    %v303 = vunpack.c.h.b16 %v142
    %v304 = vunpack.c.l.b16 %v143
    %v305 = vunpack.c.h.b16 %v143
    %v306 = vunpack.c.l.b16 %v144
    %v307 = vunpack.c.h.b16 %v144
    %v308 = vunpack.c.l.b16 %v145
    %v309 = vunpack.c.h.b16 %v145
    %v310 = vunpack.c.l.b16 %v146
    %v311 = vunpack.c.h.b16 %v146
    %v312 = vunpack.c.l.b16 %v147
    %v313 = vunpack.c.h.b16 %v147
    %v314 = vunpack.c.l.b16 %v148
    %v315 = vunpack.c.h.b16 %v148
    %v316 = vunpack.c.l.b16 %v149
    %v317 = vunpack.c.h.b16 %v149
    %v318 = vunpack.c.l.b16 %v150
    %v319 = vunpack.c.h.b16 %v150
    %v320 = vunpack.c.l.b16 %v151
    %v321 = vunpack.c.h.b16 %v151
    %v322 = vunpack.c.l.b16 %v152
    %v323 = vunpack.c.h.b16 %v152
    %v324 = vunpack.c.l.b16 %v153
    %v325 = vunpack.c.h.b16 %v153
    %v326 = vunpack.c.l.b16 %v154
    %v327 = vunpack.c.h.b16 %v154
    %v328 = vunpack.c.l.b16 %v155
    %v329 = vunpack.c.h.b16 %v155
    %v330 = vunpack.c.l.b16 %v156
    %v331 = vunpack.c.h.b16 %v156
    %v332 = vunpack.c.l.b16 %v157
    %v333 = vunpack.c.h.b16 %v157
    %v334 = vunpack.c.l.b16 %v158
    %v335 = vunpack.c.h.b16 %v158
    %v336 = vunpack.c.l.b16 %v159
    %v337 = vunpack.c.h.b16 %v159
    %v338 = vunpack.c.l.b16 %v160
    %v339 = vunpack.c.h.b16 %v160
    %v340 = vunpack.c.l.b16 %v161
    %v341 = vunpack.c.h.b16 %v161
    %v342 = vunpack.c.l.b16 %v162
    %v343 = vunpack.c.h.b16 %v162
    %v344 = vunpack.c.l.b16 %v163
    %v345 = vunpack.c.h.b16 %v163
    %v346 = vunpack.c.l.b16 %v164
    %v347 = vunpack.c.h.b16 %v164
    %v348 = vunpack.c.l.b16 %v165
    %v349 = vunpack.c.h.b16 %v165
    %v350 = vunpack.c.l.b16 %v166
    %v351 = vunpack.c.h.b16 %v166
    %v352 = vunpack.c.l.b16 %v167
    %v353 = vunpack.c.h.b16 %v167
    %v354 = vunpack.c.l.b16 %v168
    %v355 = vunpack.c.h.b16 %v168
    %v356 = vunpack.c.l.b16 %v169
    %v357 = vunpack.c.h.b16 %v169
    %v358 = vunpack.c.l.b16 %v170
    %v359 = vunpack.c.h.b16 %v170
    %v360 = vunpack.c.l.b16 %v171
    %v361 = vunpack.c.h.b16 %v171
    %v362 = vunpack.c.l.b16 %v172
    %v363 = vunpack.c.h.b16 %v172
    %v364 = vunpack.c.l.b16 %v173
    %v365 = vunpack.c.h.b16 %v173
    %v366 = vunpack.c.l.b16 %v174
    %v367 = vunpack.c.h.b16 %v174
    %v368 = vunpack.c.l.b16 %v175
    %v369 = vunpack.c.h.b16 %v175
    %v370 = vunpack.c.l.b16 %v176
    %v371 = vunpack.c.h.b16 %v176
    %v372 = vunpack.c.l.b16 %v177
    %v373 = vunpack.c.h.b16 %v177
    %v374 = vunpack.c.l.b16 %v178
    %v375 = vunpack.c.h.b16 %v178
    %v376 = vunpack.c.l.b16 %v179
    %v377 = vunpack.c.h.b16 %v179
    %v378 = vunpack.c.l.b16 %v180
    %v379 = vunpack.c.h.b16 %v180
    %v380 = vunpack.c.l.b16 %v181
    %v381 = vunpack.c.h.b16 %v181
    %v382 = vunpack.c.l.b16 %v182
    %v383 = vunpack.c.h.b16 %v182
    %v384 = vunpack.c.l.b16 %v183
    %v385 = vunpack.c.h.b16 %v183
    %v386 = vunpack.c.l.b16 %v184
    %v387 = vunpack.c.h.b16 %v184
    %v388 = vunpack.c.l.b16 %v185
    %v389 = vunpack.c.h.b16 %v185
    %v390 = vunpack.c.l.b16 %v186
    %v391 = vunpack.c.h.b16 %v186
    %v392 = vunpack.c.l.b16 %v187
    %v393 = vunpack.c.h.b16 %v187
    %v394 = vunpack.c.l.b16 %v188
    %v395 = vunpack.c.h.b16 %v188
    %v396 = vunpack.c.l.b16 %v189
    %v397 = vunpack.c.h.b16 %v189
    %v398 = vpack.c.b16 %v274, %v270
    %v399 = vpack.c.b16 %v275, %v271
    %v400 = vpack.c.b16 %v276, %v272
    %v401 = vpack.c.b16 %v277, %v273
    %v402 = vpack.c.b16 %v282, %v278
    %v403 = vpack.c.b16 %v283, %v279
    %v404 = vpack.c.b16 %v284, %v280
    %v405 = vpack.c.b16 %v285, %v281
    %v406 = vpack.c.b16 %v290, %v286
    %v407 = vpack.c.b16 %v291, %v287
    %v408 = vpack.c.b16 %v292, %v288
    %v409 = vpack.c.b16 %v293, %v289
    %v410 = vpack.c.b16 %v298, %v294
    %v411 = vpack.c.b16 %v299, %v295
    %v412 = vpack.c.b16 %v300, %v296
    %v413 = vpack.c.b16 %v301, %v297
    %v414 = vpack.c.b16 %v306, %v302
    %v415 = vpack.c.b16 %v307, %v303
    %v416 = vpack.c.b16 %v308, %v304
    %v417 = vpack.c.b16 %v309, %v305
    %v418 = vpack.c.b16 %v314, %v310
    %v419 = vpack.c.b16 %v315, %v311
    %v420 = vpack.c.b16 %v316, %v312
    %v421 = vpack.c.b16 %v317, %v313
    %v422 = vpack.c.b16 %v322, %v318
    %v423 = vpack.c.b16 %v323, %v319
    %v424 = vpack.c.b16 %v324, %v320
    %v425 = vpack.c.b16 %v325, %v321
    %v426 = vpack.c.b16 %v330, %v326
    %v427 = vpack.c.b16 %v331, %v327
    %v428 = vpack.c.b16 %v332, %v328
    %v429 = vpack.c.b16 %v333, %v329
    %v430 = vpack.c.b16 %v338, %v334
    %v431 = vpack.c.b16 %v339, %v335
    %v432 = vpack.c.b16 %v340, %v336
    %v433 = vpack.c.b16 %v341, %v337
    %v434 = vpack.c.b16 %v346, %v342
    %v435 = vpack.c.b16 %v347, %v343
    %v436 = vpack.c.b16 %v348, %v344
    %v437 = vpack.c.b16 %v349, %v345
    %v438 = vpack.c.b16 %v354, %v350
    %v439 = vpack.c.b16 %v355, %v351
    %v440 = vpack.c.b16 %v356, %v352
    %v441 = vpack.c.b16 %v357, %v353
    %v442 = vpack.c.b16 %v362, %v358
    %v443 = vpack.c.b16 %v363, %v359
    %v444 = vpack.c.b16 %v364, %v360
    %v445 = vpack.c.b16 %v365, %v361
    %v446 = vpack.c.b16 %v370, %v366
    %v447 = vpack.c.b16 %v371, %v367
    %v448 = vpack.c.b16 %v372, %v368
    %v449 = vpack.c.b16 %v373, %v369
    %v450 = vpack.c.b16 %v378, %v374
    %v451 = vpack.c.b16 %v379, %v375
    %v452 = vpack.c.b16 %v380, %v376
    %v453 = vpack.c.b16 %v381, %v377
    %v454 = vpack.c.b16 %v386, %v382
    %v455 = vpack.c.b16 %v387, %v383
    %v456 = vpack.c.b16 %v388, %v384
    %v457 = vpack.c.b16 %v389, %v385
    %v458 = vpack.c.b16 %v394, %v390
    %v459 = vpack.c.b16 %v395, %v391
    %v460 = vpack.c.b16 %v396, %v392
    %v461 = vpack.c.b16 %v397, %v393
    %526 = vmatpush.bf16.msra.mxu0 %v426
    %527 = vmatpush.bf16.msra.mxu0 %v422
    %528 = vmatpush.bf16.msra.mxu0 %v418
    %529 = vmatpush.bf16.msra.mxu0 %v414
    %530 = vmatpush.bf16.msra.mxu0 %v410
    %531 = vmatpush.bf16.msra.mxu0 %v406
    %532 = vmatpush.bf16.msra.mxu0 %v402
    %533 = vmatpush.bf16.msra.mxu0 %v398
    %534 = vmatmul.bf16.gmra.mxu0 %v202
    %v535 = vpop.f32.mrf.mxu0
    %v536 = vadd.f32 %v192, %v535
    %v537 = vpop.f32.mrf.mxu0
    %538 = vdwg.mxu0
    %539 = vmatpush.bf16.msra.mxu0 %v458
    %540 = vmatpush.bf16.msra.mxu0 %v454
    %541 = vmatpush.bf16.msra.mxu0 %v450
    %542 = vmatpush.bf16.msra.mxu0 %v446
    %543 = vmatpush.bf16.msra.mxu0 %v442
    %544 = vmatpush.bf16.msra.mxu0 %v438
    %545 = vmatpush.bf16.msra.mxu0 %v434
    %546 = vmatpush.bf16.msra.mxu0 %v430
    %547 = vmatmul.bf16.gmra.mxu0 %v203
    %v548 = vpop.f32.mrf.mxu0
    %v549 = vadd.f32 %v536, %v548
    %v550 = vpop.f32.mrf.mxu0
    %551 = vdwg.mxu0
    %552 = vmatpush.bf16.msra.mxu0 %v427
    %553 = vmatpush.bf16.msra.mxu0 %v423
    %554 = vmatpush.bf16.msra.mxu0 %v419
    %555 = vmatpush.bf16.msra.mxu0 %v415
    %556 = vmatpush.bf16.msra.mxu0 %v411
    %557 = vmatpush.bf16.msra.mxu0 %v407
    %558 = vmatpush.bf16.msra.mxu0 %v403
    %559 = vmatpush.bf16.msra.mxu0 %v399
    %560 = vmatmul.bf16.gmra.mxu0 %v202
    %v561 = vpop.f32.mrf.mxu0
    %v562 = vadd.f32 %v193, %v561
    %v563 = vpop.f32.mrf.mxu0
    %564 = vdwg.mxu0
    %565 = vmatpush.bf16.msra.mxu0 %v459
    %566 = vmatpush.bf16.msra.mxu0 %v455
    %567 = vmatpush.bf16.msra.mxu0 %v451
    %568 = vmatpush.bf16.msra.mxu0 %v447
    %569 = vmatpush.bf16.msra.mxu0 %v443
    %570 = vmatpush.bf16.msra.mxu0 %v439
    %571 = vmatpush.bf16.msra.mxu0 %v435
    %572 = vmatpush.bf16.msra.mxu0 %v431
    %573 = vmatmul.bf16.gmra.mxu0 %v203
    %v574 = vpop.f32.mrf.mxu0
    %v575 = vadd.f32 %v562, %v574
    %v576 = vpop.f32.mrf.mxu0
    %577 = vdwg.mxu0
    %578 = vmatpush.bf16.msra.mxu0 %v428
    %579 = vmatpush.bf16.msra.mxu0 %v424
    %580 = vmatpush.bf16.msra.mxu0 %v420
    %581 = vmatpush.bf16.msra.mxu0 %v416
    %582 = vmatpush.bf16.msra.mxu0 %v412
    %583 = vmatpush.bf16.msra.mxu0 %v408
    %584 = vmatpush.bf16.msra.mxu0 %v404
    %585 = vmatpush.bf16.msra.mxu0 %v400
    %586 = vmatmul.bf16.gmra.mxu0 %v202
    %v587 = vpop.f32.mrf.mxu0
    %v588 = vadd.f32 %v194, %v587
    %v589 = vpop.f32.mrf.mxu0
    %590 = vdwg.mxu0
    %591 = vmatpush.bf16.msra.mxu0 %v460
    %592 = vmatpush.bf16.msra.mxu0 %v456
    %593 = vmatpush.bf16.msra.mxu0 %v452
    %594 = vmatpush.bf16.msra.mxu0 %v448
    %595 = vmatpush.bf16.msra.mxu0 %v444
    %596 = vmatpush.bf16.msra.mxu0 %v440
    %597 = vmatpush.bf16.msra.mxu0 %v436
    %598 = vmatpush.bf16.msra.mxu0 %v432
    %599 = vmatmul.bf16.gmra.mxu0 %v203
    %v600 = vpop.f32.mrf.mxu0
    %v601 = vadd.f32 %v588, %v600
    %v602 = vpop.f32.mrf.mxu0
    %603 = vdwg.mxu0
    %604 = vmatpush.bf16.msra.mxu0 %v429
    %605 = vmatpush.bf16.msra.mxu0 %v425
    %606 = vmatpush.bf16.msra.mxu0 %v421
    %607 = vmatpush.bf16.msra.mxu0 %v417
    %608 = vmatpush.bf16.msra.mxu0 %v413
    %609 = vmatpush.bf16.msra.mxu0 %v409
    %610 = vmatpush.bf16.msra.mxu0 %v405
    %611 = vmatpush.bf16.msra.mxu0 %v401
    %612 = vmatmul.bf16.gmra.mxu0 %v202
    %v613 = vpop.f32.mrf.mxu0
    %v614 = vadd.f32 %v195, %v613
    %v615 = vpop.f32.mrf.mxu0
    %616 = vdwg.mxu0
    %617 = vmatpush.bf16.msra.mxu0 %v461
    %618 = vmatpush.bf16.msra.mxu0 %v457
    %619 = vmatpush.bf16.msra.mxu0 %v453
    %620 = vmatpush.bf16.msra.mxu0 %v449
    %621 = vmatpush.bf16.msra.mxu0 %v445
    %622 = vmatpush.bf16.msra.mxu0 %v441
    %623 = vmatpush.bf16.msra.mxu0 %v437
    %624 = vmatpush.bf16.msra.mxu0 %v433
    %625 = vmatmul.bf16.gmra.mxu0 %v203
    %v626 = vpop.f32.mrf.mxu0
    %v627 = vadd.f32 %v614, %v626
    %v628 = vpop.f32.mrf.mxu0
    %629 = vdwg.mxu0
    %vm630 = vcmp.ge.f32.partialorder %v549, 0.0
    %vm631 = vcmp.ge.f32.partialorder %v575, 0.0
    %vm632 = vcmp.ge.f32.partialorder %v601, 0.0
    %vm633 = vcmp.ge.f32.partialorder %v627, 0.0
    %v634 = vmul.f32 %v549, 0.2
    %v635 = vmul.f32 %v575, 0.2
    %v636 = vmul.f32 %v601, 0.2
    %v637 = vmul.f32 %v627, 0.2
    %v638 = vsel %vm630, %v549, %v634
    %v639 = vsel %vm631, %v575, %v635
    %v640 = vsel %vm632, %v601, %v636
    %v641 = vsel %vm633, %v627, %v637
    %v642 = vpack.c.bf16 %v638, %v638
    %v643 = vpack.c.bf16 %v639, %v639
    %v644 = vpack.c.bf16 %v640, %v640
    %v645 = vpack.c.bf16 %v641, %v641
    %v646 = vld [vmem:[#allocation5] sm:$0xff]
    %v647 = vld [vmem:[#allocation5 + $0x8] sm:$0xff]
    %v648 = vld [vmem:[#allocation5 + $0x10] sm:$0xff]
    %v649 = vld [vmem:[#allocation5 + $0x18] sm:$0xff]
    %v650 = vld [vmem:[#allocation5 + $0x20] sm:$0xff]
    %v651 = vld [vmem:[#allocation5 + $0x28] sm:$0xff]
    %v652 = vld [vmem:[#allocation5 + $0x30] sm:$0xff]
    %v653 = vld [vmem:[#allocation5 + $0x38] sm:$0xff]
    %v654 = vld [vmem:[#allocation5 + $0x40] sm:$0xff]
    %v655 = vld [vmem:[#allocation5 + $0x48] sm:$0xff]
    %v656 = vld [vmem:[#allocation5 + $0x50] sm:$0xff]
    %v657 = vld [vmem:[#allocation5 + $0x58] sm:$0xff]
    %v658 = vld [vmem:[#allocation5 + $0x60] sm:$0xff]
    %v659 = vld [vmem:[#allocation5 + $0x68] sm:$0xff]
    %v660 = vld [vmem:[#allocation5 + $0x70] sm:$0xff]
    %v661 = vld [vmem:[#allocation5 + $0x78] sm:$0xff]
    %v662 = vld [vmem:[#allocation5 + $0x80] sm:$0xff]
    %v663 = vld [vmem:[#allocation5 + $0x88] sm:$0xff]
    %v664 = vld [vmem:[#allocation5 + $0x90] sm:$0xff]
    %v665 = vld [vmem:[#allocation5 + $0x98] sm:$0xff]
    %v666 = vld [vmem:[#allocation5 + $0xa0] sm:$0xff]
    %v667 = vld [vmem:[#allocation5 + $0xa8] sm:$0xff]
    %v668 = vld [vmem:[#allocation5 + $0xb0] sm:$0xff]
    %v669 = vld [vmem:[#allocation5 + $0xb8] sm:$0xff]
    %v670 = vld [vmem:[#allocation5 + $0xc0] sm:$0xff]
    %v671 = vld [vmem:[#allocation5 + $0xc8] sm:$0xff]
    %v672 = vld [vmem:[#allocation5 + $0xd0] sm:$0xff]
    %v673 = vld [vmem:[#allocation5 + $0xd8] sm:$0xff]
    %v674 = vld [vmem:[#allocation5 + $0xe0] sm:$0xff]
    %v675 = vld [vmem:[#allocation5 + $0xe8] sm:$0xff]
    %v676 = vld [vmem:[#allocation5 + $0xf0] sm:$0xff]
    %v677 = vld [vmem:[#allocation5 + $0xf8] sm:$0xff]
    %v678 = vld [vmem:[#allocation5 + $0x100] sm:$0xff]
    %v679 = vld [vmem:[#allocation5 + $0x108] sm:$0xff]
    %v680 = vld [vmem:[#allocation5 + $0x110] sm:$0xff]
    %v681 = vld [vmem:[#allocation5 + $0x118] sm:$0xff]
    %v682 = vld [vmem:[#allocation5 + $0x120] sm:$0xff]
    %v683 = vld [vmem:[#allocation5 + $0x128] sm:$0xff]
    %v684 = vld [vmem:[#allocation5 + $0x130] sm:$0xff]
    %v685 = vld [vmem:[#allocation5 + $0x138] sm:$0xff]
    %v686 = vld [vmem:[#allocation5 + $0x140] sm:$0xff]
    %v687 = vld [vmem:[#allocation5 + $0x148] sm:$0xff]
    %v688 = vld [vmem:[#allocation5 + $0x150] sm:$0xff]
    %v689 = vld [vmem:[#allocation5 + $0x158] sm:$0xff]
    %v690 = vld [vmem:[#allocation5 + $0x160] sm:$0xff]
    %v691 = vld [vmem:[#allocation5 + $0x168] sm:$0xff]
    %v692 = vld [vmem:[#allocation5 + $0x170] sm:$0xff]
    %v693 = vld [vmem:[#allocation5 + $0x178] sm:$0xff]
    %v694 = vld [vmem:[#allocation5 + $0x180] sm:$0xff]
    %v695 = vld [vmem:[#allocation5 + $0x188] sm:$0xff]
    %v696 = vld [vmem:[#allocation5 + $0x190] sm:$0xff]
    %v697 = vld [vmem:[#allocation5 + $0x198] sm:$0xff]
    %v698 = vld [vmem:[#allocation5 + $0x1a0] sm:$0xff]
    %v699 = vld [vmem:[#allocation5 + $0x1a8] sm:$0xff]
    %v700 = vld [vmem:[#allocation5 + $0x1b0] sm:$0xff]
    %v701 = vld [vmem:[#allocation5 + $0x1b8] sm:$0xff]
    %v702 = vld [vmem:[#allocation5 + $0x1c0] sm:$0xff]
    %v703 = vld [vmem:[#allocation5 + $0x1c8] sm:$0xff]
    %v704 = vld [vmem:[#allocation5 + $0x1d0] sm:$0xff]
    %v705 = vld [vmem:[#allocation5 + $0x1d8] sm:$0xff]
    %v706 = vld [vmem:[#allocation5 + $0x1e0] sm:$0xff]
    %v707 = vld [vmem:[#allocation5 + $0x1e8] sm:$0xff]
    %v708 = vld [vmem:[#allocation5 + $0x1f0] sm:$0xff]
    %v709 = vld [vmem:[#allocation5 + $0x1f8] sm:$0xff]
    %v710 = vld [vmem:[%s4] sm:$0x3]
    %v712 = vperm.slane %v710, 0
    %v713 = vperm.slane %v710, 1
    %v780 = vunpack.c.l.b16 %v646
    %v781 = vunpack.c.h.b16 %v646
    %v782 = vunpack.c.l.b16 %v647
    %v783 = vunpack.c.h.b16 %v647
    %v784 = vunpack.c.l.b16 %v648
    %v785 = vunpack.c.h.b16 %v648
    %v786 = vunpack.c.l.b16 %v649
    %v787 = vunpack.c.h.b16 %v649
    %v788 = vunpack.c.l.b16 %v650
    %v789 = vunpack.c.h.b16 %v650
    %v790 = vunpack.c.l.b16 %v651
    %v791 = vunpack.c.h.b16 %v651
    %v792 = vunpack.c.l.b16 %v652
    %v793 = vunpack.c.h.b16 %v652
    %v794 = vunpack.c.l.b16 %v653
    %v795 = vunpack.c.h.b16 %v653
    %v796 = vunpack.c.l.b16 %v654
    %v797 = vunpack.c.h.b16 %v654
    %v798 = vunpack.c.l.b16 %v655
    %v799 = vunpack.c.h.b16 %v655
    %v800 = vunpack.c.l.b16 %v656
    %v801 = vunpack.c.h.b16 %v656
    %v802 = vunpack.c.l.b16 %v657
    %v803 = vunpack.c.h.b16 %v657
    %v804 = vunpack.c.l.b16 %v658
    %v805 = vunpack.c.h.b16 %v658
    %v806 = vunpack.c.l.b16 %v659
    %v807 = vunpack.c.h.b16 %v659
    %v808 = vunpack.c.l.b16 %v660
    %v809 = vunpack.c.h.b16 %v660
    %v810 = vunpack.c.l.b16 %v661
    %v811 = vunpack.c.h.b16 %v661
    %v812 = vunpack.c.l.b16 %v662
    %v813 = vunpack.c.h.b16 %v662
    %v814 = vunpack.c.l.b16 %v663
    %v815 = vunpack.c.h.b16 %v663
    %v816 = vunpack.c.l.b16 %v664
    %v817 = vunpack.c.h.b16 %v664
    %v818 = vunpack.c.l.b16 %v665
    %v819 = vunpack.c.h.b16 %v665
    %v820 = vunpack.c.l.b16 %v666
    %v821 = vunpack.c.h.b16 %v666
    %v822 = vunpack.c.l.b16 %v667
    %v823 = vunpack.c.h.b16 %v667
    %v824 = vunpack.c.l.b16 %v668
    %v825 = vunpack.c.h.b16 %v668
    %v826 = vunpack.c.l.b16 %v669
    %v827 = vunpack.c.h.b16 %v669
    %v828 = vunpack.c.l.b16 %v670
    %v829 = vunpack.c.h.b16 %v670
    %v830 = vunpack.c.l.b16 %v671
    %v831 = vunpack.c.h.b16 %v671
    %v832 = vunpack.c.l.b16 %v672
    %v833 = vunpack.c.h.b16 %v672
    %v834 = vunpack.c.l.b16 %v673
    %v835 = vunpack.c.h.b16 %v673
    %v836 = vunpack.c.l.b16 %v674
    %v837 = vunpack.c.h.b16 %v674
    %v838 = vunpack.c.l.b16 %v675
    %v839 = vunpack.c.h.b16 %v675
    %v840 = vunpack.c.l.b16 %v676
    %v841 = vunpack.c.h.b16 %v676
    %v842 = vunpack.c.l.b16 %v677
    %v843 = vunpack.c.h.b16 %v677
    %v844 = vunpack.c.l.b16 %v678
    %v845 = vunpack.c.h.b16 %v678
    %v846 = vunpack.c.l.b16 %v679
    %v847 = vunpack.c.h.b16 %v679
    %v848 = vunpack.c.l.b16 %v680
    %v849 = vunpack.c.h.b16 %v680
    %v850 = vunpack.c.l.b16 %v681
    %v851 = vunpack.c.h.b16 %v681
    %v852 = vunpack.c.l.b16 %v682
    %v853 = vunpack.c.h.b16 %v682
    %v854 = vunpack.c.l.b16 %v683
    %v855 = vunpack.c.h.b16 %v683
    %v856 = vunpack.c.l.b16 %v684
    %v857 = vunpack.c.h.b16 %v684
    %v858 = vunpack.c.l.b16 %v685
    %v859 = vunpack.c.h.b16 %v685
    %v860 = vunpack.c.l.b16 %v686
    %v861 = vunpack.c.h.b16 %v686
    %v862 = vunpack.c.l.b16 %v687
    %v863 = vunpack.c.h.b16 %v687
    %v864 = vunpack.c.l.b16 %v688
    %v865 = vunpack.c.h.b16 %v688
    %v866 = vunpack.c.l.b16 %v689
    %v867 = vunpack.c.h.b16 %v689
    %v868 = vunpack.c.l.b16 %v690
    %v869 = vunpack.c.h.b16 %v690
    %v870 = vunpack.c.l.b16 %v691
    %v871 = vunpack.c.h.b16 %v691
    %v872 = vunpack.c.l.b16 %v692
    %v873 = vunpack.c.h.b16 %v692
    %v874 = vunpack.c.l.b16 %v693
    %v875 = vunpack.c.h.b16 %v693
    %v876 = vunpack.c.l.b16 %v694
    %v877 = vunpack.c.h.b16 %v694
    %v878 = vunpack.c.l.b16 %v695
    %v879 = vunpack.c.h.b16 %v695
    %v880 = vunpack.c.l.b16 %v696
    %v881 = vunpack.c.h.b16 %v696
    %v882 = vunpack.c.l.b16 %v697
    %v883 = vunpack.c.h.b16 %v697
    %v884 = vunpack.c.l.b16 %v698
    %v885 = vunpack.c.h.b16 %v698
    %v886 = vunpack.c.l.b16 %v699
    %v887 = vunpack.c.h.b16 %v699
    %v888 = vunpack.c.l.b16 %v700
    %v889 = vunpack.c.h.b16 %v700
    %v890 = vunpack.c.l.b16 %v701
    %v891 = vunpack.c.h.b16 %v701
    %v892 = vunpack.c.l.b16 %v702
    %v893 = vunpack.c.h.b16 %v702
    %v894 = vunpack.c.l.b16 %v703
    %v895 = vunpack.c.h.b16 %v703
    %v896 = vunpack.c.l.b16 %v704
    %v897 = vunpack.c.h.b16 %v704
    %v898 = vunpack.c.l.b16 %v705
    %v899 = vunpack.c.h.b16 %v705
    %v900 = vunpack.c.l.b16 %v706
    %v901 = vunpack.c.h.b16 %v706
    %v902 = vunpack.c.l.b16 %v707
    %v903 = vunpack.c.h.b16 %v707
    %v904 = vunpack.c.l.b16 %v708
    %v905 = vunpack.c.h.b16 %v708
    %v906 = vunpack.c.l.b16 %v709
    %v907 = vunpack.c.h.b16 %v709
    %v908 = vpack.c.b16 %v782, %v780
    %v909 = vpack.c.b16 %v783, %v781
    %v910 = vpack.c.b16 %v786, %v784
    %v911 = vpack.c.b16 %v787, %v785
    %v912 = vpack.c.b16 %v790, %v788
    %v913 = vpack.c.b16 %v791, %v789
    %v914 = vpack.c.b16 %v794, %v792
    %v915 = vpack.c.b16 %v795, %v793
    %v916 = vpack.c.b16 %v798, %v796
    %v917 = vpack.c.b16 %v799, %v797
    %v918 = vpack.c.b16 %v802, %v800
    %v919 = vpack.c.b16 %v803, %v801
    %v920 = vpack.c.b16 %v806, %v804
    %v921 = vpack.c.b16 %v807, %v805
    %v922 = vpack.c.b16 %v810, %v808
    %v923 = vpack.c.b16 %v811, %v809
    %v924 = vpack.c.b16 %v814, %v812
    %v925 = vpack.c.b16 %v815, %v813
    %v926 = vpack.c.b16 %v818, %v816
    %v927 = vpack.c.b16 %v819, %v817
    %v928 = vpack.c.b16 %v822, %v820
    %v929 = vpack.c.b16 %v823, %v821
    %v930 = vpack.c.b16 %v826, %v824
    %v931 = vpack.c.b16 %v827, %v825
    %v932 = vpack.c.b16 %v830, %v828
    %v933 = vpack.c.b16 %v831, %v829
    %v934 = vpack.c.b16 %v834, %v832
    %v935 = vpack.c.b16 %v835, %v833
    %v936 = vpack.c.b16 %v838, %v836
    %v937 = vpack.c.b16 %v839, %v837
    %v938 = vpack.c.b16 %v842, %v840
    %v939 = vpack.c.b16 %v843, %v841
    %v940 = vpack.c.b16 %v846, %v844
    %v941 = vpack.c.b16 %v847, %v845
    %v942 = vpack.c.b16 %v850, %v848
    %v943 = vpack.c.b16 %v851, %v849
    %v944 = vpack.c.b16 %v854, %v852
    %v945 = vpack.c.b16 %v855, %v853
    %v946 = vpack.c.b16 %v858, %v856
    %v947 = vpack.c.b16 %v859, %v857
    %v948 = vpack.c.b16 %v862, %v860
    %v949 = vpack.c.b16 %v863, %v861
    %v950 = vpack.c.b16 %v866, %v864
    %v951 = vpack.c.b16 %v867, %v865
    %v952 = vpack.c.b16 %v870, %v868
    %v953 = vpack.c.b16 %v871, %v869
    %v954 = vpack.c.b16 %v874, %v872
    %v955 = vpack.c.b16 %v875, %v873
    %v956 = vpack.c.b16 %v878, %v876
    %v957 = vpack.c.b16 %v879, %v877
    %v958 = vpack.c.b16 %v882, %v880
    %v959 = vpack.c.b16 %v883, %v881
    %v960 = vpack.c.b16 %v886, %v884
    %v961 = vpack.c.b16 %v887, %v885
    %v962 = vpack.c.b16 %v890, %v888
    %v963 = vpack.c.b16 %v891, %v889
    %v964 = vpack.c.b16 %v894, %v892
    %v965 = vpack.c.b16 %v895, %v893
    %v966 = vpack.c.b16 %v898, %v896
    %v967 = vpack.c.b16 %v899, %v897
    %v968 = vpack.c.b16 %v902, %v900
    %v969 = vpack.c.b16 %v903, %v901
    %v970 = vpack.c.b16 %v906, %v904
    %v971 = vpack.c.b16 %v907, %v905
    %1036 = vmatpush.bf16.msra.mxu0 %v922
    %1037 = vmatpush.bf16.msra.mxu0 %v920
    %1038 = vmatpush.bf16.msra.mxu0 %v918
    %1039 = vmatpush.bf16.msra.mxu0 %v916
    %1040 = vmatpush.bf16.msra.mxu0 %v914
    %1041 = vmatpush.bf16.msra.mxu0 %v912
    %1042 = vmatpush.bf16.msra.mxu0 %v910
    %1043 = vmatpush.bf16.msra.mxu0 %v908
    %1044 = vmatmul.bf16.gmra.mxu0 %v642
    %v1045 = vpop.f32.mrf.mxu0
    %v1046 = vadd.f32 %v712, %v1045
    %v1047 = vpop.f32.mrf.mxu0
    %1048 = vdwg.mxu0
    %1049 = vmatpush.bf16.msra.mxu0 %v938
    %1050 = vmatpush.bf16.msra.mxu0 %v936
    %1051 = vmatpush.bf16.msra.mxu0 %v934
    %1052 = vmatpush.bf16.msra.mxu0 %v932
    %1053 = vmatpush.bf16.msra.mxu0 %v930
    %1054 = vmatpush.bf16.msra.mxu0 %v928
    %1055 = vmatpush.bf16.msra.mxu0 %v926
    %1056 = vmatpush.bf16.msra.mxu0 %v924
    %1057 = vmatmul.bf16.gmra.mxu0 %v643
    %v1058 = vpop.f32.mrf.mxu0
    %v1059 = vadd.f32 %v1046, %v1058
    %v1060 = vpop.f32.mrf.mxu0
    %1061 = vdwg.mxu0
    %1062 = vmatpush.bf16.msra.mxu0 %v954
    %1063 = vmatpush.bf16.msra.mxu0 %v952
    %1064 = vmatpush.bf16.msra.mxu0 %v950
    %1065 = vmatpush.bf16.msra.mxu0 %v948
    %1066 = vmatpush.bf16.msra.mxu0 %v946
    %1067 = vmatpush.bf16.msra.mxu0 %v944
    %1068 = vmatpush.bf16.msra.mxu0 %v942
    %1069 = vmatpush.bf16.msra.mxu0 %v940
    %1070 = vmatmul.bf16.gmra.mxu0 %v644
    %v1071 = vpop.f32.mrf.mxu0
    %v1072 = vadd.f32 %v1059, %v1071
    %v1073 = vpop.f32.mrf.mxu0
    %1074 = vdwg.mxu0
    %1075 = vmatpush.bf16.msra.mxu0 %v970
    %1076 = vmatpush.bf16.msra.mxu0 %v968
    %1077 = vmatpush.bf16.msra.mxu0 %v966
    %1078 = vmatpush.bf16.msra.mxu0 %v964
    %1079 = vmatpush.bf16.msra.mxu0 %v962
    %1080 = vmatpush.bf16.msra.mxu0 %v960
    %1081 = vmatpush.bf16.msra.mxu0 %v958
    %1082 = vmatpush.bf16.msra.mxu0 %v956
    %1083 = vmatmul.bf16.gmra.mxu0 %v645
    %v1084 = vpop.f32.mrf.mxu0
    %v1085 = vadd.f32 %v1072, %v1084
    %v1086 = vpop.f32.mrf.mxu0
    %1087 = vdwg.mxu0
    %1088 = vmatpush.bf16.msra.mxu0 %v923
    %1089 = vmatpush.bf16.msra.mxu0 %v921
    %1090 = vmatpush.bf16.msra.mxu0 %v919
    %1091 = vmatpush.bf16.msra.mxu0 %v917
    %1092 = vmatpush.bf16.msra.mxu0 %v915
    %1093 = vmatpush.bf16.msra.mxu0 %v913
    %1094 = vmatpush.bf16.msra.mxu0 %v911
    %1095 = vmatpush.bf16.msra.mxu0 %v909
    %1096 = vmatmul.bf16.gmra.mxu0 %v642
    %v1097 = vpop.f32.mrf.mxu0
    %v1098 = vadd.f32 %v713, %v1097
    %v1099 = vpop.f32.mrf.mxu0
    %1100 = vdwg.mxu0
    %1101 = vmatpush.bf16.msra.mxu0 %v939
    %1102 = vmatpush.bf16.msra.mxu0 %v937
    %1103 = vmatpush.bf16.msra.mxu0 %v935
    %1104 = vmatpush.bf16.msra.mxu0 %v933
    %1105 = vmatpush.bf16.msra.mxu0 %v931
    %1106 = vmatpush.bf16.msra.mxu0 %v929
    %1107 = vmatpush.bf16.msra.mxu0 %v927
    %1108 = vmatpush.bf16.msra.mxu0 %v925
    %1109 = vmatmul.bf16.gmra.mxu0 %v643
    %v1110 = vpop.f32.mrf.mxu0
    %v1111 = vadd.f32 %v1098, %v1110
    %v1112 = vpop.f32.mrf.mxu0
    %1113 = vdwg.mxu0
    %1114 = vmatpush.bf16.msra.mxu0 %v955
    %1115 = vmatpush.bf16.msra.mxu0 %v953
    %1116 = vmatpush.bf16.msra.mxu0 %v951
    %1117 = vmatpush.bf16.msra.mxu0 %v949
    %1118 = vmatpush.bf16.msra.mxu0 %v947
    %1119 = vmatpush.bf16.msra.mxu0 %v945
    %1120 = vmatpush.bf16.msra.mxu0 %v943
    %1121 = vmatpush.bf16.msra.mxu0 %v941
    %1122 = vmatmul.bf16.gmra.mxu0 %v644
    %v1123 = vpop.f32.mrf.mxu0
    %v1124 = vadd.f32 %v1111, %v1123
    %v1125 = vpop.f32.mrf.mxu0
    %1126 = vdwg.mxu0
    %1127 = vmatpush.bf16.msra.mxu0 %v971
    %1128 = vmatpush.bf16.msra.mxu0 %v969
    %1129 = vmatpush.bf16.msra.mxu0 %v967
    %1130 = vmatpush.bf16.msra.mxu0 %v965
    %1131 = vmatpush.bf16.msra.mxu0 %v963
    %1132 = vmatpush.bf16.msra.mxu0 %v961
    %1133 = vmatpush.bf16.msra.mxu0 %v959
    %1134 = vmatpush.bf16.msra.mxu0 %v957
    %1135 = vmatmul.bf16.gmra.mxu0 %v645
    %v1136 = vpop.f32.mrf.mxu0
    %v1137 = vadd.f32 %v1124, %v1136
    %v1138 = vpop.f32.mrf.mxu0
    %1139 = vdwg.mxu0
    %vm1140 = vcmp.ge.f32.partialorder %v1085, 0.0
    %vm1141 = vcmp.ge.f32.partialorder %v1137, 0.0
    %v1142 = vmul.f32 %v1085, 0.2
    %v1143 = vmul.f32 %v1137, 0.2
    %v1144 = vsel %vm1140, %v1085, %v1142
    %v1145 = vsel %vm1141, %v1137, %v1143
    %v1146 = vpack.c.bf16 %v1144, %v1144
    %v1147 = vpack.c.bf16 %v1145, %v1145
    %v1148 = vld [vmem:[#allocation7] sm:$0xf]
    %v1149 = vld [vmem:[#allocation7 + $0x4] sm:$0xf]
    %v1150 = vld [vmem:[#allocation7 + $0x8] sm:$0xf]
    %v1151 = vld [vmem:[#allocation7 + $0xc] sm:$0xf]
    %v1152 = vld [vmem:[#allocation7 + $0x10] sm:$0xf]
    %v1153 = vld [vmem:[#allocation7 + $0x14] sm:$0xf]
    %v1154 = vld [vmem:[#allocation7 + $0x18] sm:$0xf]
    %v1155 = vld [vmem:[#allocation7 + $0x1c] sm:$0xf]
    %v1156 = vld [vmem:[#allocation7 + $0x20] sm:$0xf]
    %v1157 = vld [vmem:[#allocation7 + $0x24] sm:$0xf]
    %v1158 = vld [vmem:[#allocation7 + $0x28] sm:$0xf]
    %v1159 = vld [vmem:[#allocation7 + $0x2c] sm:$0xf]
    %v1160 = vld [vmem:[#allocation7 + $0x30] sm:$0xf]
    %v1161 = vld [vmem:[#allocation7 + $0x34] sm:$0xf]
    %v1162 = vld [vmem:[#allocation7 + $0x38] sm:$0xf]
    %v1163 = vld [vmem:[#allocation7 + $0x3c] sm:$0xf]
    %v1164 = vld [vmem:[#allocation7 + $0x40] sm:$0xf]
    %v1165 = vld [vmem:[#allocation7 + $0x44] sm:$0xf]
    %v1166 = vld [vmem:[#allocation7 + $0x48] sm:$0xf]
    %v1167 = vld [vmem:[#allocation7 + $0x4c] sm:$0xf]
    %v1168 = vld [vmem:[#allocation7 + $0x50] sm:$0xf]
    %v1169 = vld [vmem:[#allocation7 + $0x54] sm:$0xf]
    %v1170 = vld [vmem:[#allocation7 + $0x58] sm:$0xf]
    %v1171 = vld [vmem:[#allocation7 + $0x5c] sm:$0xf]
    %v1172 = vld [vmem:[#allocation7 + $0x60] sm:$0xf]
    %v1173 = vld [vmem:[#allocation7 + $0x64] sm:$0xf]
    %v1174 = vld [vmem:[#allocation7 + $0x68] sm:$0xf]
    %v1175 = vld [vmem:[#allocation7 + $0x6c] sm:$0xf]
    %v1176 = vld [vmem:[#allocation7 + $0x70] sm:$0xf]
    %v1177 = vld [vmem:[#allocation7 + $0x74] sm:$0xf]
    %v1178 = vld [vmem:[#allocation7 + $0x78] sm:$0xf]
    %v1179 = vld [vmem:[#allocation7 + $0x7c] sm:$0xf]
    %v1180 = vld [vmem:[%s6] sm:$0x1]
    %v1182 = vperm.slane %v1180, 0
    %v1216 = vunpack.c.l.b16 %v1148
    %v1217 = vunpack.c.l.b16 %v1149
    %v1218 = vunpack.c.l.b16 %v1150
    %v1219 = vunpack.c.l.b16 %v1151
    %v1220 = vunpack.c.l.b16 %v1152
    %v1221 = vunpack.c.l.b16 %v1153
    %v1222 = vunpack.c.l.b16 %v1154
    %v1223 = vunpack.c.l.b16 %v1155
    %v1224 = vunpack.c.l.b16 %v1156
    %v1225 = vunpack.c.l.b16 %v1157
    %v1226 = vunpack.c.l.b16 %v1158
    %v1227 = vunpack.c.l.b16 %v1159
    %v1228 = vunpack.c.l.b16 %v1160
    %v1229 = vunpack.c.l.b16 %v1161
    %v1230 = vunpack.c.l.b16 %v1162
    %v1231 = vunpack.c.l.b16 %v1163
    %v1232 = vunpack.c.l.b16 %v1164
    %v1233 = vunpack.c.l.b16 %v1165
    %v1234 = vunpack.c.l.b16 %v1166
    %v1235 = vunpack.c.l.b16 %v1167
    %v1236 = vunpack.c.l.b16 %v1168
    %v1237 = vunpack.c.l.b16 %v1169
    %v1238 = vunpack.c.l.b16 %v1170
    %v1239 = vunpack.c.l.b16 %v1171
    %v1240 = vunpack.c.l.b16 %v1172
    %v1241 = vunpack.c.l.b16 %v1173
    %v1242 = vunpack.c.l.b16 %v1174
    %v1243 = vunpack.c.l.b16 %v1175
    %v1244 = vunpack.c.l.b16 %v1176
    %v1245 = vunpack.c.l.b16 %v1177
    %v1246 = vunpack.c.l.b16 %v1178
    %v1247 = vunpack.c.l.b16 %v1179
    %v1248 = vpack.c.b16 %v1217, %v1216
    %v1249 = vpack.c.b16 %v1219, %v1218
    %v1250 = vpack.c.b16 %v1221, %v1220
    %v1251 = vpack.c.b16 %v1223, %v1222
    %v1252 = vpack.c.b16 %v1225, %v1224
    %v1253 = vpack.c.b16 %v1227, %v1226
    %v1254 = vpack.c.b16 %v1229, %v1228
    %v1255 = vpack.c.b16 %v1231, %v1230
    %v1256 = vpack.c.b16 %v1233, %v1232
    %v1257 = vpack.c.b16 %v1235, %v1234
    %v1258 = vpack.c.b16 %v1237, %v1236
    %v1259 = vpack.c.b16 %v1239, %v1238
    %v1260 = vpack.c.b16 %v1241, %v1240
    %v1261 = vpack.c.b16 %v1243, %v1242
    %v1262 = vpack.c.b16 %v1245, %v1244
    %v1263 = vpack.c.b16 %v1247, %v1246
    %1280 = vmatpush.bf16.msra.mxu0 %v1255
    %1281 = vmatpush.bf16.msra.mxu0 %v1254
    %1282 = vmatpush.bf16.msra.mxu0 %v1253
    %1283 = vmatpush.bf16.msra.mxu0 %v1252
    %1284 = vmatpush.bf16.msra.mxu0 %v1251
    %1285 = vmatpush.bf16.msra.mxu0 %v1250
    %1286 = vmatpush.bf16.msra.mxu0 %v1249
    %1287 = vmatpush.bf16.msra.mxu0 %v1248
    %1288 = vmatmul.bf16.gmra.mxu0 %v1146
    %v1289 = vpop.f32.mrf.mxu0
    %v1290 = vadd.f32 %v1182, %v1289
    %v1291 = vpop.f32.mrf.mxu0
    %1292 = vdwg.mxu0
    %1293 = vmatpush.bf16.msra.mxu0 %v1263
    %1294 = vmatpush.bf16.msra.mxu0 %v1262
    %1295 = vmatpush.bf16.msra.mxu0 %v1261
    %1296 = vmatpush.bf16.msra.mxu0 %v1260
    %1297 = vmatpush.bf16.msra.mxu0 %v1259
    %1298 = vmatpush.bf16.msra.mxu0 %v1258
    %1299 = vmatpush.bf16.msra.mxu0 %v1257
    %1300 = vmatpush.bf16.msra.mxu0 %v1256
    %1301 = vmatmul.bf16.gmra.mxu0 %v1147
    %v1302 = vpop.f32.mrf.mxu0
    %v1303 = vadd.f32 %v1290, %v1302
    %v1304 = vpop.f32.mrf.mxu0
    %1305 = vdwg.mxu0
    %v1306 = vld [vmem:[#allocation8] sm:$0xf]
    %v1307 = vld [vmem:[#allocation8 + $0x4] sm:$0xf]
    %v1308 = vld [vmem:[#allocation8 + $0x8] sm:$0xf]
    %v1309 = vld [vmem:[#allocation8 + $0xc] sm:$0xf]
    %v1310 = vld [vmem:[#allocation8 + $0x10] sm:$0xf]
    %v1311 = vld [vmem:[#allocation8 + $0x14] sm:$0xf]
    %v1312 = vld [vmem:[#allocation8 + $0x18] sm:$0xf]
    %v1313 = vld [vmem:[#allocation8 + $0x1c] sm:$0xf]
    %v1314 = vld [vmem:[#allocation8 + $0x20] sm:$0xf]
    %v1315 = vld [vmem:[#allocation8 + $0x24] sm:$0xf]
    %v1316 = vld [vmem:[#allocation8 + $0x28] sm:$0xf]
    %v1317 = vld [vmem:[#allocation8 + $0x2c] sm:$0xf]
    %v1318 = vld [vmem:[#allocation8 + $0x30] sm:$0xf]
    %v1319 = vld [vmem:[#allocation8 + $0x34] sm:$0xf]
    %v1320 = vld [vmem:[#allocation8 + $0x38] sm:$0xf]
    %v1321 = vld [vmem:[#allocation8 + $0x3c] sm:$0xf]
    %v1322 = vld [vmem:[#allocation8 + $0x40] sm:$0xf]
    %v1323 = vld [vmem:[#allocation8 + $0x44] sm:$0xf]
    %v1324 = vld [vmem:[#allocation8 + $0x48] sm:$0xf]
    %v1325 = vld [vmem:[#allocation8 + $0x4c] sm:$0xf]
    %v1326 = vld [vmem:[#allocation8 + $0x50] sm:$0xf]
    %v1327 = vld [vmem:[#allocation8 + $0x54] sm:$0xf]
    %v1328 = vld [vmem:[#allocation8 + $0x58] sm:$0xf]
    %v1329 = vld [vmem:[#allocation8 + $0x5c] sm:$0xf]
    %v1330 = vld [vmem:[#allocation8 + $0x60] sm:$0xf]
    %v1331 = vld [vmem:[#allocation8 + $0x64] sm:$0xf]
    %v1332 = vld [vmem:[#allocation8 + $0x68] sm:$0xf]
    %v1333 = vld [vmem:[#allocation8 + $0x6c] sm:$0xf]
    %v1334 = vld [vmem:[#allocation8 + $0x70] sm:$0xf]
    %v1335 = vld [vmem:[#allocation8 + $0x74] sm:$0xf]
    %v1336 = vld [vmem:[#allocation8 + $0x78] sm:$0xf]
    %v1337 = vld [vmem:[#allocation8 + $0x7c] sm:$0xf]
    %v1338 = vld [vmem:[%s8] sm:$0x1]
    %v1340 = vperm.slane %v1338, 0
    %v1374 = vunpack.c.l.b16 %v1306
    %v1375 = vunpack.c.l.b16 %v1307
    %v1376 = vunpack.c.l.b16 %v1308
    %v1377 = vunpack.c.l.b16 %v1309
    %v1378 = vunpack.c.l.b16 %v1310
    %v1379 = vunpack.c.l.b16 %v1311
    %v1380 = vunpack.c.l.b16 %v1312
    %v1381 = vunpack.c.l.b16 %v1313
    %v1382 = vunpack.c.l.b16 %v1314
    %v1383 = vunpack.c.l.b16 %v1315
    %v1384 = vunpack.c.l.b16 %v1316
    %v1385 = vunpack.c.l.b16 %v1317
    %v1386 = vunpack.c.l.b16 %v1318
    %v1387 = vunpack.c.l.b16 %v1319
    %v1388 = vunpack.c.l.b16 %v1320
    %v1389 = vunpack.c.l.b16 %v1321
    %v1390 = vunpack.c.l.b16 %v1322
    %v1391 = vunpack.c.l.b16 %v1323
    %v1392 = vunpack.c.l.b16 %v1324
    %v1393 = vunpack.c.l.b16 %v1325
    %v1394 = vunpack.c.l.b16 %v1326
    %v1395 = vunpack.c.l.b16 %v1327
    %v1396 = vunpack.c.l.b16 %v1328
    %v1397 = vunpack.c.l.b16 %v1329
    %v1398 = vunpack.c.l.b16 %v1330
    %v1399 = vunpack.c.l.b16 %v1331
    %v1400 = vunpack.c.l.b16 %v1332
    %v1401 = vunpack.c.l.b16 %v1333
    %v1402 = vunpack.c.l.b16 %v1334
    %v1403 = vunpack.c.l.b16 %v1335
    %v1404 = vunpack.c.l.b16 %v1336
    %v1405 = vunpack.c.l.b16 %v1337
    %v1406 = vpack.c.b16 %v1375, %v1374
    %v1407 = vpack.c.b16 %v1377, %v1376
    %v1408 = vpack.c.b16 %v1379, %v1378
    %v1409 = vpack.c.b16 %v1381, %v1380
    %v1410 = vpack.c.b16 %v1383, %v1382
    %v1411 = vpack.c.b16 %v1385, %v1384
    %v1412 = vpack.c.b16 %v1387, %v1386
    %v1413 = vpack.c.b16 %v1389, %v1388
    %v1414 = vpack.c.b16 %v1391, %v1390
    %v1415 = vpack.c.b16 %v1393, %v1392
    %v1416 = vpack.c.b16 %v1395, %v1394
    %v1417 = vpack.c.b16 %v1397, %v1396
    %v1418 = vpack.c.b16 %v1399, %v1398
    %v1419 = vpack.c.b16 %v1401, %v1400
    %v1420 = vpack.c.b16 %v1403, %v1402
    %v1421 = vpack.c.b16 %v1405, %v1404
    %1438 = vmatpush.bf16.msra.mxu0 %v1413
    %1439 = vmatpush.bf16.msra.mxu0 %v1412
    %1440 = vmatpush.bf16.msra.mxu0 %v1411
    %1441 = vmatpush.bf16.msra.mxu0 %v1410
    %1442 = vmatpush.bf16.msra.mxu0 %v1409
    %1443 = vmatpush.bf16.msra.mxu0 %v1408
    %1444 = vmatpush.bf16.msra.mxu0 %v1407
    %1445 = vmatpush.bf16.msra.mxu0 %v1406
    %1446 = vmatmul.bf16.gmra.mxu0 %v1146
    %v1447 = vpop.f32.mrf.mxu0
    %v1448 = vadd.f32 %v1340, %v1447
    %v1449 = vpop.f32.mrf.mxu0
    %1450 = vdwg.mxu0
    %1451 = vmatpush.bf16.msra.mxu0 %v1421
    %1452 = vmatpush.bf16.msra.mxu0 %v1420
    %1453 = vmatpush.bf16.msra.mxu0 %v1419
    %1454 = vmatpush.bf16.msra.mxu0 %v1418
    %1455 = vmatpush.bf16.msra.mxu0 %v1417
    %1456 = vmatpush.bf16.msra.mxu0 %v1416
    %1457 = vmatpush.bf16.msra.mxu0 %v1415
    %1458 = vmatpush.bf16.msra.mxu0 %v1414
    %1459 = vmatmul.bf16.gmra.mxu0 %v1147
    %v1460 = vpop.f32.mrf.mxu0
    %v1461 = vadd.f32 %v1448, %v1460
    %v1462 = vpop.f32.mrf.mxu0
    %1463 = vdwg.mxu0
    %vm1464 = vcmask 123904
    %1465 = vst.msk [vmem:[#allocation11] sm:$0x3] %vm1464, %v1303
    %1466 = vst.msk [vmem:[#allocation12] sm:$0x3] %vm1464, %v1461
    %v1467 = vpack.c.bf16 %v1303, %v1303
    %v1468 = vld [vmem:[%s9] sm:$0xff]
    %v1469 = vld [vmem:[%s9 + $0x8] sm:$0xff]
    %v1470 = vld [vmem:[%s9 + $0x10] sm:$0xff]
    %v1471 = vld [vmem:[%s9 + $0x18] sm:$0xff]
    %v1472 = vld [vmem:[%s10] sm:$0xf]
    %v1474 = vperm.slane %v1472, 0
    %v1475 = vperm.slane %v1472, 1
    %v1476 = vperm.slane %v1472, 2
    %v1477 = vperm.slane %v1472, 3
    %v1486 = vunpack.c.l.b16 %v1468
    %v1487 = vunpack.c.h.b16 %v1468
    %v1488 = vunpack.c.l.b16 %v1469
    %v1489 = vunpack.c.h.b16 %v1469
    %v1490 = vunpack.c.l.b16 %v1470
    %v1491 = vunpack.c.h.b16 %v1470
    %v1492 = vunpack.c.l.b16 %v1471
    %v1493 = vunpack.c.h.b16 %v1471
    %v1494 = vpack.c.b16 %v1490, %v1486
    %v1495 = vpack.c.b16 %v1491, %v1487
    %v1496 = vpack.c.b16 %v1492, %v1488
    %v1497 = vpack.c.b16 %v1493, %v1489
    %vm1502 = vcmask 130048
    %v1504 = vsel %vm1502, %v1467, 0
    %1506 = vmatpush.bf16.msra.mxu0 0
    %1507 = vmatpush.bf16.msra.mxu0 0
    %1508 = vmatpush.bf16.msra.mxu0 0
    %1509 = vmatpush.bf16.msra.mxu0 0
    %1510 = vmatpush.bf16.msra.mxu0 0
    %1511 = vmatpush.bf16.msra.mxu0 0
    %1512 = vmatpush.bf16.msra.mxu0 0
    %1513 = vmatpush.bf16.msra.mxu0 %v1494
    %1514 = vmatmul.bf16.gmra.mxu0 %v1504
    %v1515 = vpop.f32.mrf.mxu0
    %v1516 = vadd.f32 %v1474, %v1515
    %v1517 = vpop.f32.mrf.mxu0
    %1518 = vdwg.mxu0
    %1519 = vmatpush.bf16.msra.mxu0 0
    %1520 = vmatpush.bf16.msra.mxu0 0
    %1521 = vmatpush.bf16.msra.mxu0 0
    %1522 = vmatpush.bf16.msra.mxu0 0
    %1523 = vmatpush.bf16.msra.mxu0 0
    %1524 = vmatpush.bf16.msra.mxu0 0
    %1525 = vmatpush.bf16.msra.mxu0 0
    %1526 = vmatpush.bf16.msra.mxu0 %v1495
    %1527 = vmatmul.bf16.gmra.mxu0 %v1504
    %v1528 = vpop.f32.mrf.mxu0
    %v1529 = vadd.f32 %v1475, %v1528
    %v1530 = vpop.f32.mrf.mxu0
    %1531 = vdwg.mxu0
    %1532 = vmatpush.bf16.msra.mxu0 0
    %1533 = vmatpush.bf16.msra.mxu0 0
    %1534 = vmatpush.bf16.msra.mxu0 0
    %1535 = vmatpush.bf16.msra.mxu0 0
    %1536 = vmatpush.bf16.msra.mxu0 0
    %1537 = vmatpush.bf16.msra.mxu0 0
    %1538 = vmatpush.bf16.msra.mxu0 0
    %1539 = vmatpush.bf16.msra.mxu0 %v1496
    %1540 = vmatmul.bf16.gmra.mxu0 %v1504
    %v1541 = vpop.f32.mrf.mxu0
    %v1542 = vadd.f32 %v1476, %v1541
    %v1543 = vpop.f32.mrf.mxu0
    %1544 = vdwg.mxu0
    %1545 = vmatpush.bf16.msra.mxu0 0
    %1546 = vmatpush.bf16.msra.mxu0 0
    %1547 = vmatpush.bf16.msra.mxu0 0
    %1548 = vmatpush.bf16.msra.mxu0 0
    %1549 = vmatpush.bf16.msra.mxu0 0
    %1550 = vmatpush.bf16.msra.mxu0 0
    %1551 = vmatpush.bf16.msra.mxu0 0
    %1552 = vmatpush.bf16.msra.mxu0 %v1497
    %1553 = vmatmul.bf16.gmra.mxu0 %v1504
    %v1554 = vpop.f32.mrf.mxu0
    %v1555 = vadd.f32 %v1477, %v1554
    %v1556 = vpop.f32.mrf.mxu0
    %1557 = vdwg.mxu0
    %v1558 = vmax.f32 %v1516, 0.0
    %v1559 = vmax.f32 %v1529, 0.0
    %v1560 = vmax.f32 %v1542, 0.0
    %v1561 = vmax.f32 %v1555, 0.0
    %v1562 = vpack.c.bf16 %v1558, %v1558
    %v1563 = vpack.c.bf16 %v1559, %v1559
    %v1564 = vpack.c.bf16 %v1560, %v1560
    %v1565 = vpack.c.bf16 %v1561, %v1561
    %v1566 = vld [vmem:[#allocation10] sm:$0xff]
    %v1567 = vld [vmem:[#allocation10 + $0x8] sm:$0xff]
    %v1568 = vld [vmem:[#allocation10 + $0x10] sm:$0xff]
    %v1569 = vld [vmem:[#allocation10 + $0x18] sm:$0xff]
    %v1570 = vld [vmem:[#allocation10 + $0x20] sm:$0xff]
    %v1571 = vld [vmem:[#allocation10 + $0x28] sm:$0xff]
    %v1572 = vld [vmem:[#allocation10 + $0x30] sm:$0xff]
    %v1573 = vld [vmem:[#allocation10 + $0x38] sm:$0xff]
    %v1574 = vld [vmem:[#allocation10 + $0x40] sm:$0xff]
    %v1575 = vld [vmem:[#allocation10 + $0x48] sm:$0xff]
    %v1576 = vld [vmem:[#allocation10 + $0x50] sm:$0xff]
    %v1577 = vld [vmem:[#allocation10 + $0x58] sm:$0xff]
    %v1578 = vld [vmem:[#allocation10 + $0x60] sm:$0xff]
    %v1579 = vld [vmem:[#allocation10 + $0x68] sm:$0xff]
    %v1580 = vld [vmem:[#allocation10 + $0x70] sm:$0xff]
    %v1581 = vld [vmem:[#allocation10 + $0x78] sm:$0xff]
    %v1582 = vld [vmem:[#allocation10 + $0x80] sm:$0xff]
    %v1583 = vld [vmem:[#allocation10 + $0x88] sm:$0xff]
    %v1584 = vld [vmem:[#allocation10 + $0x90] sm:$0xff]
    %v1585 = vld [vmem:[#allocation10 + $0x98] sm:$0xff]
    %v1586 = vld [vmem:[#allocation10 + $0xa0] sm:$0xff]
    %v1587 = vld [vmem:[#allocation10 + $0xa8] sm:$0xff]
    %v1588 = vld [vmem:[#allocation10 + $0xb0] sm:$0xff]
    %v1589 = vld [vmem:[#allocation10 + $0xb8] sm:$0xff]
    %v1590 = vld [vmem:[#allocation10 + $0xc0] sm:$0xff]
    %v1591 = vld [vmem:[#allocation10 + $0xc8] sm:$0xff]
    %v1592 = vld [vmem:[#allocation10 + $0xd0] sm:$0xff]
    %v1593 = vld [vmem:[#allocation10 + $0xd8] sm:$0xff]
    %v1594 = vld [vmem:[#allocation10 + $0xe0] sm:$0xff]
    %v1595 = vld [vmem:[#allocation10 + $0xe8] sm:$0xff]
    %v1596 = vld [vmem:[#allocation10 + $0xf0] sm:$0xff]
    %v1597 = vld [vmem:[#allocation10 + $0xf8] sm:$0xff]
    %v1598 = vld [vmem:[#allocation10 + $0x100] sm:$0xff]
    %v1599 = vld [vmem:[#allocation10 + $0x108] sm:$0xff]
    %v1600 = vld [vmem:[#allocation10 + $0x110] sm:$0xff]
    %v1601 = vld [vmem:[#allocation10 + $0x118] sm:$0xff]
    %v1602 = vld [vmem:[#allocation10 + $0x120] sm:$0xff]
    %v1603 = vld [vmem:[#allocation10 + $0x128] sm:$0xff]
    %v1604 = vld [vmem:[#allocation10 + $0x130] sm:$0xff]
    %v1605 = vld [vmem:[#allocation10 + $0x138] sm:$0xff]
    %v1606 = vld [vmem:[#allocation10 + $0x140] sm:$0xff]
    %v1607 = vld [vmem:[#allocation10 + $0x148] sm:$0xff]
    %v1608 = vld [vmem:[#allocation10 + $0x150] sm:$0xff]
    %v1609 = vld [vmem:[#allocation10 + $0x158] sm:$0xff]
    %v1610 = vld [vmem:[#allocation10 + $0x160] sm:$0xff]
    %v1611 = vld [vmem:[#allocation10 + $0x168] sm:$0xff]
    %v1612 = vld [vmem:[#allocation10 + $0x170] sm:$0xff]
    %v1613 = vld [vmem:[#allocation10 + $0x178] sm:$0xff]
    %v1614 = vld [vmem:[#allocation10 + $0x180] sm:$0xff]
    %v1615 = vld [vmem:[#allocation10 + $0x188] sm:$0xff]
    %v1616 = vld [vmem:[#allocation10 + $0x190] sm:$0xff]
    %v1617 = vld [vmem:[#allocation10 + $0x198] sm:$0xff]
    %v1618 = vld [vmem:[#allocation10 + $0x1a0] sm:$0xff]
    %v1619 = vld [vmem:[#allocation10 + $0x1a8] sm:$0xff]
    %v1620 = vld [vmem:[#allocation10 + $0x1b0] sm:$0xff]
    %v1621 = vld [vmem:[#allocation10 + $0x1b8] sm:$0xff]
    %v1622 = vld [vmem:[#allocation10 + $0x1c0] sm:$0xff]
    %v1623 = vld [vmem:[#allocation10 + $0x1c8] sm:$0xff]
    %v1624 = vld [vmem:[#allocation10 + $0x1d0] sm:$0xff]
    %v1625 = vld [vmem:[#allocation10 + $0x1d8] sm:$0xff]
    %v1626 = vld [vmem:[#allocation10 + $0x1e0] sm:$0xff]
    %v1627 = vld [vmem:[#allocation10 + $0x1e8] sm:$0xff]
    %v1628 = vld [vmem:[#allocation10 + $0x1f0] sm:$0xff]
    %v1629 = vld [vmem:[#allocation10 + $0x1f8] sm:$0xff]
    %v1694 = vunpack.c.l.b16 %v1566
    %v1695 = vunpack.c.h.b16 %v1566
    %v1696 = vunpack.c.l.b16 %v1567
    %v1697 = vunpack.c.h.b16 %v1567
    %v1698 = vunpack.c.l.b16 %v1568
    %v1699 = vunpack.c.h.b16 %v1568
    %v1700 = vunpack.c.l.b16 %v1569
    %v1701 = vunpack.c.h.b16 %v1569
    %v1702 = vunpack.c.l.b16 %v1570
    %v1703 = vunpack.c.h.b16 %v1570
    %v1704 = vunpack.c.l.b16 %v1571
    %v1705 = vunpack.c.h.b16 %v1571
    %v1706 = vunpack.c.l.b16 %v1572
    %v1707 = vunpack.c.h.b16 %v1572
    %v1708 = vunpack.c.l.b16 %v1573
    %v1709 = vunpack.c.h.b16 %v1573
    %v1710 = vunpack.c.l.b16 %v1574
    %v1711 = vunpack.c.h.b16 %v1574
    %v1712 = vunpack.c.l.b16 %v1575
    %v1713 = vunpack.c.h.b16 %v1575
    %v1714 = vunpack.c.l.b16 %v1576
    %v1715 = vunpack.c.h.b16 %v1576
    %v1716 = vunpack.c.l.b16 %v1577
    %v1717 = vunpack.c.h.b16 %v1577
    %v1718 = vunpack.c.l.b16 %v1578
    %v1719 = vunpack.c.h.b16 %v1578
    %v1720 = vunpack.c.l.b16 %v1579
    %v1721 = vunpack.c.h.b16 %v1579
    %v1722 = vunpack.c.l.b16 %v1580
    %v1723 = vunpack.c.h.b16 %v1580
    %v1724 = vunpack.c.l.b16 %v1581
    %v1725 = vunpack.c.h.b16 %v1581
    %v1726 = vunpack.c.l.b16 %v1582
    %v1727 = vunpack.c.h.b16 %v1582
    %v1728 = vunpack.c.l.b16 %v1583
    %v1729 = vunpack.c.h.b16 %v1583
    %v1730 = vunpack.c.l.b16 %v1584
    %v1731 = vunpack.c.h.b16 %v1584
    %v1732 = vunpack.c.l.b16 %v1585
    %v1733 = vunpack.c.h.b16 %v1585
    %v1734 = vunpack.c.l.b16 %v1586
    %v1735 = vunpack.c.h.b16 %v1586
    %v1736 = vunpack.c.l.b16 %v1587
    %v1737 = vunpack.c.h.b16 %v1587
    %v1738 = vunpack.c.l.b16 %v1588
    %v1739 = vunpack.c.h.b16 %v1588
    %v1740 = vunpack.c.l.b16 %v1589
    %v1741 = vunpack.c.h.b16 %v1589
    %v1742 = vunpack.c.l.b16 %v1590
    %v1743 = vunpack.c.h.b16 %v1590
    %v1744 = vunpack.c.l.b16 %v1591
    %v1745 = vunpack.c.h.b16 %v1591
    %v1746 = vunpack.c.l.b16 %v1592
    %v1747 = vunpack.c.h.b16 %v1592
    %v1748 = vunpack.c.l.b16 %v1593
    %v1749 = vunpack.c.h.b16 %v1593
    %v1750 = vunpack.c.l.b16 %v1594
    %v1751 = vunpack.c.h.b16 %v1594
    %v1752 = vunpack.c.l.b16 %v1595
    %v1753 = vunpack.c.h.b16 %v1595
    %v1754 = vunpack.c.l.b16 %v1596
    %v1755 = vunpack.c.h.b16 %v1596
    %v1756 = vunpack.c.l.b16 %v1597
    %v1757 = vunpack.c.h.b16 %v1597
    %v1758 = vunpack.c.l.b16 %v1598
    %v1759 = vunpack.c.h.b16 %v1598
    %v1760 = vunpack.c.l.b16 %v1599
    %v1761 = vunpack.c.h.b16 %v1599
    %v1762 = vunpack.c.l.b16 %v1600
    %v1763 = vunpack.c.h.b16 %v1600
    %v1764 = vunpack.c.l.b16 %v1601
    %v1765 = vunpack.c.h.b16 %v1601
    %v1766 = vunpack.c.l.b16 %v1602
    %v1767 = vunpack.c.h.b16 %v1602
    %v1768 = vunpack.c.l.b16 %v1603
    %v1769 = vunpack.c.h.b16 %v1603
    %v1770 = vunpack.c.l.b16 %v1604
    %v1771 = vunpack.c.h.b16 %v1604
    %v1772 = vunpack.c.l.b16 %v1605
    %v1773 = vunpack.c.h.b16 %v1605
    %v1774 = vunpack.c.l.b16 %v1606
    %v1775 = vunpack.c.h.b16 %v1606
    %v1776 = vunpack.c.l.b16 %v1607
    %v1777 = vunpack.c.h.b16 %v1607
    %v1778 = vunpack.c.l.b16 %v1608
    %v1779 = vunpack.c.h.b16 %v1608
    %v1780 = vunpack.c.l.b16 %v1609
    %v1781 = vunpack.c.h.b16 %v1609
    %v1782 = vunpack.c.l.b16 %v1610
    %v1783 = vunpack.c.h.b16 %v1610
    %v1784 = vunpack.c.l.b16 %v1611
    %v1785 = vunpack.c.h.b16 %v1611
    %v1786 = vunpack.c.l.b16 %v1612
    %v1787 = vunpack.c.h.b16 %v1612
    %v1788 = vunpack.c.l.b16 %v1613
    %v1789 = vunpack.c.h.b16 %v1613
    %v1790 = vunpack.c.l.b16 %v1614
    %v1791 = vunpack.c.h.b16 %v1614
    %v1792 = vunpack.c.l.b16 %v1615
    %v1793 = vunpack.c.h.b16 %v1615
    %v1794 = vunpack.c.l.b16 %v1616
    %v1795 = vunpack.c.h.b16 %v1616
    %v1796 = vunpack.c.l.b16 %v1617
    %v1797 = vunpack.c.h.b16 %v1617
    %v1798 = vunpack.c.l.b16 %v1618
    %v1799 = vunpack.c.h.b16 %v1618
    %v1800 = vunpack.c.l.b16 %v1619
    %v1801 = vunpack.c.h.b16 %v1619
    %v1802 = vunpack.c.l.b16 %v1620
    %v1803 = vunpack.c.h.b16 %v1620
    %v1804 = vunpack.c.l.b16 %v1621
    %v1805 = vunpack.c.h.b16 %v1621
    %v1806 = vunpack.c.l.b16 %v1622
    %v1807 = vunpack.c.h.b16 %v1622
    %v1808 = vunpack.c.l.b16 %v1623
    %v1809 = vunpack.c.h.b16 %v1623
    %v1810 = vunpack.c.l.b16 %v1624
    %v1811 = vunpack.c.h.b16 %v1624
    %v1812 = vunpack.c.l.b16 %v1625
    %v1813 = vunpack.c.h.b16 %v1625
    %v1814 = vunpack.c.l.b16 %v1626
    %v1815 = vunpack.c.h.b16 %v1626
    %v1816 = vunpack.c.l.b16 %v1627
    %v1817 = vunpack.c.h.b16 %v1627
    %v1818 = vunpack.c.l.b16 %v1628
    %v1819 = vunpack.c.h.b16 %v1628
    %v1820 = vunpack.c.l.b16 %v1629
    %v1821 = vunpack.c.h.b16 %v1629
    %v1822 = vpack.c.b16 %v1696, %v1694
    %v1823 = vpack.c.b16 %v1697, %v1695
    %v1824 = vpack.c.b16 %v1700, %v1698
    %v1825 = vpack.c.b16 %v1701, %v1699
    %v1826 = vpack.c.b16 %v1704, %v1702
    %v1827 = vpack.c.b16 %v1705, %v1703
    %v1828 = vpack.c.b16 %v1708, %v1706
    %v1829 = vpack.c.b16 %v1709, %v1707
    %v1830 = vpack.c.b16 %v1712, %v1710
    %v1831 = vpack.c.b16 %v1713, %v1711
    %v1832 = vpack.c.b16 %v1716, %v1714
    %v1833 = vpack.c.b16 %v1717, %v1715
    %v1834 = vpack.c.b16 %v1720, %v1718
    %v1835 = vpack.c.b16 %v1721, %v1719
    %v1836 = vpack.c.b16 %v1724, %v1722
    %v1837 = vpack.c.b16 %v1725, %v1723
    %v1838 = vpack.c.b16 %v1728, %v1726
    %v1839 = vpack.c.b16 %v1729, %v1727
    %v1840 = vpack.c.b16 %v1732, %v1730
    %v1841 = vpack.c.b16 %v1733, %v1731
    %v1842 = vpack.c.b16 %v1736, %v1734
    %v1843 = vpack.c.b16 %v1737, %v1735
    %v1844 = vpack.c.b16 %v1740, %v1738
    %v1845 = vpack.c.b16 %v1741, %v1739
    %v1846 = vpack.c.b16 %v1744, %v1742
    %v1847 = vpack.c.b16 %v1745, %v1743
    %v1848 = vpack.c.b16 %v1748, %v1746
    %v1849 = vpack.c.b16 %v1749, %v1747
    %v1850 = vpack.c.b16 %v1752, %v1750
    %v1851 = vpack.c.b16 %v1753, %v1751
    %v1852 = vpack.c.b16 %v1756, %v1754
    %v1853 = vpack.c.b16 %v1757, %v1755
    %v1854 = vpack.c.b16 %v1760, %v1758
    %v1855 = vpack.c.b16 %v1761, %v1759
    %v1856 = vpack.c.b16 %v1764, %v1762
    %v1857 = vpack.c.b16 %v1765, %v1763
    %v1858 = vpack.c.b16 %v1768, %v1766
    %v1859 = vpack.c.b16 %v1769, %v1767
    %v1860 = vpack.c.b16 %v1772, %v1770
    %v1861 = vpack.c.b16 %v1773, %v1771
    %v1862 = vpack.c.b16 %v1776, %v1774
    %v1863 = vpack.c.b16 %v1777, %v1775
    %v1864 = vpack.c.b16 %v1780, %v1778
    %v1865 = vpack.c.b16 %v1781, %v1779
    %v1866 = vpack.c.b16 %v1784, %v1782
    %v1867 = vpack.c.b16 %v1785, %v1783
    %v1868 = vpack.c.b16 %v1788, %v1786
    %v1869 = vpack.c.b16 %v1789, %v1787
    %v1870 = vpack.c.b16 %v1792, %v1790
    %v1871 = vpack.c.b16 %v1793, %v1791
    %v1872 = vpack.c.b16 %v1796, %v1794
    %v1873 = vpack.c.b16 %v1797, %v1795
    %v1874 = vpack.c.b16 %v1800, %v1798
    %v1875 = vpack.c.b16 %v1801, %v1799
    %v1876 = vpack.c.b16 %v1804, %v1802
    %v1877 = vpack.c.b16 %v1805, %v1803
    %v1878 = vpack.c.b16 %v1808, %v1806
    %v1879 = vpack.c.b16 %v1809, %v1807
    %v1880 = vpack.c.b16 %v1812, %v1810
    %v1881 = vpack.c.b16 %v1813, %v1811
    %v1882 = vpack.c.b16 %v1816, %v1814
    %v1883 = vpack.c.b16 %v1817, %v1815
    %v1884 = vpack.c.b16 %v1820, %v1818
    %v1885 = vpack.c.b16 %v1821, %v1819
    %1950 = vmatpush.bf16.msra.mxu0 %v1836
    %1951 = vmatpush.bf16.msra.mxu0 %v1834
    %1952 = vmatpush.bf16.msra.mxu0 %v1832
    %1953 = vmatpush.bf16.msra.mxu0 %v1830
    %1954 = vmatpush.bf16.msra.mxu0 %v1828
    %1955 = vmatpush.bf16.msra.mxu0 %v1826
    %1956 = vmatpush.bf16.msra.mxu0 %v1824
    %1957 = vmatpush.bf16.msra.mxu0 %v1822
    %1958 = vmatmul.bf16.gmra.mxu0 %v1562
    %v1959 = vpop.f32.mrf.mxu0
    %v1960 = vadd.f32 0.0, %v1959
    %v1961 = vpop.f32.mrf.mxu0
    %1962 = vdwg.mxu0
    %1963 = vmatpush.bf16.msra.mxu0 %v1852
    %1964 = vmatpush.bf16.msra.mxu0 %v1850
    %1965 = vmatpush.bf16.msra.mxu0 %v1848
    %1966 = vmatpush.bf16.msra.mxu0 %v1846
    %1967 = vmatpush.bf16.msra.mxu0 %v1844
    %1968 = vmatpush.bf16.msra.mxu0 %v1842
    %1969 = vmatpush.bf16.msra.mxu0 %v1840
    %1970 = vmatpush.bf16.msra.mxu0 %v1838
    %1971 = vmatmul.bf16.gmra.mxu0 %v1563
    %v1972 = vpop.f32.mrf.mxu0
    %v1973 = vadd.f32 %v1960, %v1972
    %v1974 = vpop.f32.mrf.mxu0
    %1975 = vdwg.mxu0
    %1976 = vmatpush.bf16.msra.mxu0 %v1868
    %1977 = vmatpush.bf16.msra.mxu0 %v1866
    %1978 = vmatpush.bf16.msra.mxu0 %v1864
    %1979 = vmatpush.bf16.msra.mxu0 %v1862
    %1980 = vmatpush.bf16.msra.mxu0 %v1860
    %1981 = vmatpush.bf16.msra.mxu0 %v1858
    %1982 = vmatpush.bf16.msra.mxu0 %v1856
    %1983 = vmatpush.bf16.msra.mxu0 %v1854
    %1984 = vmatmul.bf16.gmra.mxu0 %v1564
    %v1985 = vpop.f32.mrf.mxu0
    %v1986 = vadd.f32 %v1973, %v1985
    %v1987 = vpop.f32.mrf.mxu0
    %1988 = vdwg.mxu0
    %1989 = vmatpush.bf16.msra.mxu0 %v1884
    %1990 = vmatpush.bf16.msra.mxu0 %v1882
    %1991 = vmatpush.bf16.msra.mxu0 %v1880
    %1992 = vmatpush.bf16.msra.mxu0 %v1878
    %1993 = vmatpush.bf16.msra.mxu0 %v1876
    %1994 = vmatpush.bf16.msra.mxu0 %v1874
    %1995 = vmatpush.bf16.msra.mxu0 %v1872
    %1996 = vmatpush.bf16.msra.mxu0 %v1870
    %1997 = vmatmul.bf16.gmra.mxu0 %v1565
    %v1998 = vpop.f32.mrf.mxu0
    %v1999 = vadd.f32 %v1986, %v1998
    %v2000 = vpop.f32.mrf.mxu0
    %2001 = vdwg.mxu0
    %2002 = vmatpush.bf16.msra.mxu0 %v1837
    %2003 = vmatpush.bf16.msra.mxu0 %v1835
    %2004 = vmatpush.bf16.msra.mxu0 %v1833
    %2005 = vmatpush.bf16.msra.mxu0 %v1831
    %2006 = vmatpush.bf16.msra.mxu0 %v1829
    %2007 = vmatpush.bf16.msra.mxu0 %v1827
    %2008 = vmatpush.bf16.msra.mxu0 %v1825
    %2009 = vmatpush.bf16.msra.mxu0 %v1823
    %2010 = vmatmul.bf16.gmra.mxu0 %v1562
    %v2011 = vpop.f32.mrf.mxu0
    %v2012 = vadd.f32 0.0, %v2011
    %v2013 = vpop.f32.mrf.mxu0
    %2014 = vdwg.mxu0
    %2015 = vmatpush.bf16.msra.mxu0 %v1853
    %2016 = vmatpush.bf16.msra.mxu0 %v1851
    %2017 = vmatpush.bf16.msra.mxu0 %v1849
    %2018 = vmatpush.bf16.msra.mxu0 %v1847
    %2019 = vmatpush.bf16.msra.mxu0 %v1845
    %2020 = vmatpush.bf16.msra.mxu0 %v1843
    %2021 = vmatpush.bf16.msra.mxu0 %v1841
    %2022 = vmatpush.bf16.msra.mxu0 %v1839
    %2023 = vmatmul.bf16.gmra.mxu0 %v1563
    %v2024 = vpop.f32.mrf.mxu0
    %v2025 = vadd.f32 %v2012, %v2024
    %v2026 = vpop.f32.mrf.mxu0
    %2027 = vdwg.mxu0
    %2028 = vmatpush.bf16.msra.mxu0 %v1869
    %2029 = vmatpush.bf16.msra.mxu0 %v1867
    %2030 = vmatpush.bf16.msra.mxu0 %v1865
    %2031 = vmatpush.bf16.msra.mxu0 %v1863
    %2032 = vmatpush.bf16.msra.mxu0 %v1861
    %2033 = vmatpush.bf16.msra.mxu0 %v1859
    %2034 = vmatpush.bf16.msra.mxu0 %v1857
    %2035 = vmatpush.bf16.msra.mxu0 %v1855
    %2036 = vmatmul.bf16.gmra.mxu0 %v1564
    %v2037 = vpop.f32.mrf.mxu0
    %v2038 = vadd.f32 %v2025, %v2037
    %v2039 = vpop.f32.mrf.mxu0
    %2040 = vdwg.mxu0
    %2041 = vmatpush.bf16.msra.mxu0 %v1885
    %2042 = vmatpush.bf16.msra.mxu0 %v1883
    %2043 = vmatpush.bf16.msra.mxu0 %v1881
    %2044 = vmatpush.bf16.msra.mxu0 %v1879
    %2045 = vmatpush.bf16.msra.mxu0 %v1877
    %2046 = vmatpush.bf16.msra.mxu0 %v1875
    %2047 = vmatpush.bf16.msra.mxu0 %v1873
    %2048 = vmatpush.bf16.msra.mxu0 %v1871
    %2049 = vmatmul.bf16.gmra.mxu0 %v1565
    %v2050 = vpop.f32.mrf.mxu0
    %v2051 = vadd.f32 %v2038, %v2050
    %v2052 = vpop.f32.mrf.mxu0
    %2053 = vdwg.mxu0
    %v2054 = vsub.f32 0.0, %v1999
    %v2055 = vsub.f32 0.0, %v2051
    %v2056 = vmul.f32 %v2054, 1.442695
    %v2057 = vpow.pop %v2056
    %v2058 = vmul.f32 %v2055, 1.442695
    %v2059 = vpow.pop %v2058
    %v2060 = vadd.f32 %v2057, 1.0
    %v2061 = vadd.f32 %v2059, 1.0
    %v2062 = vrcp.pop %v2060
    %v2063 = vrcp.pop %v2061
    %v2064 = vmax.f32 %v2062, 0.0
    %v2065 = vmax.f32 %v2063, 0.0
    %v2066 = vmin.f32 %v2064, 1.0
    %v2067 = vmin.f32 %v2065, 1.0
    %v2070 = vrot.slane %v2067, 6
    %vm2071 = vcmask 1041408
    %v2072 = vsel %vm2071, %v2066, %v2070
    %2074 = vst [vmem:[%s12] sm:$0xf] %v2072
    // Predicated region
    $region70: #{_lambda_.1} parent=1 // pred_check
      _
    $region71: #{_lambda_.1} parent=1 // pred_check_branch
      %2076 = sbr.rel (0) target = $region73
    $region72: #{_lambda_.1} parent=1 // pred_region
      _
    $region73: #{_lambda_.1} parent=1 // pred_fallthru
      _
    // Predicated region
    $region74: #{_lambda_.1} parent=1 // pred_check
      _
    $region75: #{_lambda_.1} parent=1 // pred_check_branch
      %2078 = sbr.rel (0) target = $region77
    $region76: #{_lambda_.1} parent=1 // pred_region
      %2080 = vsyncadd [#allocation4], 0
      %s2082 = sshll.u32 [#allocation11], 4
      %s2083 = int_to_ptr.vmem [resolvable:$true] %s2082
      %s2084 = sshll.u32 %s13, 4
      %s2085 = int_to_ptr.hbm [resolvable:$true] %s2084
      %2087 = dma.vmem_to_hbm [thread:$0]  %s2083, 32, %s2085, [#allocation4]
    $region77: #{_lambda_.1} parent=1 // pred_fallthru
      _
    // Predicated region
    $region78: #{_lambda_.1} parent=1 // pred_check
      _
    $region79: #{_lambda_.1} parent=1 // pred_check_branch
      %2089 = sbr.rel (0) target = $region81
    $region80: #{_lambda_.1} parent=1 // pred_region
      %2091 = vsyncadd [#allocation13], 0
      %s2093 = sshll.u32 [#allocation12], 4
      %s2094 = int_to_ptr.vmem [resolvable:$true] %s2093
      %s2095 = sshll.u32 %s14, 4
      %s2096 = int_to_ptr.hbm [resolvable:$true] %s2095
      %2098 = dma.vmem_to_hbm [thread:$0]  %s2094, 32, %s2096, [#allocation13]
    $region81: #{_lambda_.1} parent=1 // pred_fallthru
      _
    // Predicated region
    $region82: #{_lambda_.1} parent=1 // pred_check
      _
    $region83: #{_lambda_.1} parent=1 // pred_check_branch
      %2100 = sbr.rel (0) target = $region85
    $region84: #{_lambda_.1} parent=1 // pred_region
      _
    $region85: #{_lambda_.1} parent=1 // pred_fallthru
      _
    // Predicated region
    $region86: #{_lambda_.1} parent=1 // pred_check
      _
    $region87: #{_lambda_.1} parent=1 // pred_check_branch
      %2102 = sbr.rel (0) target = $region89
    $region88: #{_lambda_.1} parent=1 // pred_region
      %2104 = dma.done [#allocation4], 32
    $region89: #{_lambda_.1} parent=1 // pred_fallthru
      _
    // Predicated region
    $region90: #{_lambda_.1} parent=1 // pred_check
      _
    $region91: #{_lambda_.1} parent=1 // pred_check_branch
      %2106 = sbr.rel (0) target = $region93
    $region92: #{_lambda_.1} parent=1 // pred_region
      %2108 = dma.done [#allocation13], 32
    $region93: #{_lambda_.1} parent=1 // pred_fallthru
      _
    %2109 = vsyncpa [#allocation3], 1
    %2110 = vsyncpa [#allocation6], 1
    %2111 = vsyncpa [#allocation9], 1
    %2112 = vsyncpa [#allocation4], 1
    %2113 = vsyncpa [#allocation13], 1

</llo_original>
